<compile_context>
chip_gen: v6e
topology: v6e:2x2x1
jax: 0.10.0
libtpu: 0.0.40
codegen_flags: <defaults>
</compile_context>

<pallas_src>
import functools
import math

import jax
import jax.numpy as jnp
from jax.experimental import pallas as pl
from jax.experimental.pallas import tpu as pltpu


# ---------------------------------------------------------------------------
# Tiling helpers
# ---------------------------------------------------------------------------
def _row_tile(n: int, cap: int = 256) -> int:
    """Largest multiple-of-8 tile <= cap dividing n (sublane axis); else n."""
    t = min(cap, n)
    t -= t % 8
    while t >= 8:
        if n % t == 0:
            return t
        t -= 8
    return n


def _lane_tile(n: int, cap: int = 512) -> int:
    """Largest multiple-of-128 tile <= cap dividing n (lane axis); else n."""
    t = min(cap, n)
    t -= t % 128
    while t >= 128:
        if n % t == 0:
            return t
        t -= 128
    return n


# Contract x[-1] with w[-1]  ->  x @ W^T  (PyTorch nn.Linear (out, in) layout;
# same transposed-RHS contraction pattern the MXU already handles for q@k^T,
# so no per-call HBM transpose of the weights is needed).
_DN_XWT = (((1,), (1,)), ((), ()))


# ---------------------------------------------------------------------------
# Fused QKV projection, weights tiled along d_model (K axis) + f32 accumulators
# ---------------------------------------------------------------------------
def _qkv_proj_kernel(x_ref, wq_ref, wk_ref, wv_ref, q_ref, k_ref, v_ref,
                     qacc, kacc, vacc):
    ks = pl.program_id(1)

    @pl.when(ks == 0)
    def _init():
        qacc[...] = jnp.zeros_like(qacc)
        kacc[...] = jnp.zeros_like(kacc)
        vacc[...] = jnp.zeros_like(vacc)

    x = x_ref[...]
    qacc[...] += jax.lax.dot_general(x, wq_ref[...], _DN_XWT,
                                     preferred_element_type=jnp.float32)
    kacc[...] += jax.lax.dot_general(x, wk_ref[...], _DN_XWT,
                                     preferred_element_type=jnp.float32)
    vacc[...] += jax.lax.dot_general(x, wv_ref[...], _DN_XWT,
                                     preferred_element_type=jnp.float32)

    @pl.when(ks == pl.num_programs(1) - 1)
    def _fin():
        q_ref[...] = qacc[...].astype(q_ref.dtype)
        k_ref[...] = kacc[...].astype(k_ref.dtype)
        v_ref[...] = vacc[...].astype(v_ref.dtype)


def qkv_projection(x2d, wq, wk, wv, *, tm, tk):
    M, dm = x2d.shape
    q_out, kv_out = wq.shape[0], wk.shape[0]
    grid_spec = pltpu.PrefetchScalarGridSpec(
        num_scalar_prefetch=0,
        grid=(M // tm, dm // tk),
        in_specs=[
            pl.BlockSpec((tm, tk), lambda i, k: (i, k)),
            # Only an (n_out, tk) weight slab is resident per step.
            pl.BlockSpec((q_out, tk), lambda i, k: (0, k)),
            pl.BlockSpec((kv_out, tk), lambda i, k: (0, k)),
            pl.BlockSpec((kv_out, tk), lambda i, k: (0, k)),
        ],
        out_specs=[
            pl.BlockSpec((tm, q_out), lambda i, k: (i, 0)),
            pl.BlockSpec((tm, kv_out), lambda i, k: (i, 0)),
            pl.BlockSpec((tm, kv_out), lambda i, k: (i, 0)),
        ],
        scratch_shapes=[
            pltpu.VMEM((tm, q_out), jnp.float32),
            pltpu.VMEM((tm, kv_out), jnp.float32),
            pltpu.VMEM((tm, kv_out), jnp.float32),
        ],
    )
    return pl.pallas_call(
        _qkv_proj_kernel,
        out_shape=(
            jax.ShapeDtypeStruct((M, q_out), x2d.dtype),
            jax.ShapeDtypeStruct((M, kv_out), x2d.dtype),
            jax.ShapeDtypeStruct((M, kv_out), x2d.dtype),
        ),
        grid_spec=grid_spec,
        compiler_params=pltpu.CompilerParams(
            dimension_semantics=("parallel", "arbitrary"),
            # Above the 32 MiB default scoped limit, below v7x's 64 MiB VMEM.
            vmem_limit_bytes=48 * 1024 * 1024),
    )(x2d, wq, wk, wv)


# ---------------------------------------------------------------------------
# Generic (M, N, K)-tiled linear:  y = x @ W^T   (used for wo)
# ---------------------------------------------------------------------------
def _linear_kernel(x_ref, w_ref, o_ref, acc):
    ks = pl.program_id(2)

    @pl.when(ks == 0)
    def _init():
        acc[...] = jnp.zeros_like(acc)

    acc[...] += jax.lax.dot_general(x_ref[...], w_ref[...], _DN_XWT,
                                    preferred_element_type=jnp.float32)

    @pl.when(ks == pl.num_programs(2) - 1)
    def _fin():
        o_ref[...] = acc[...].astype(o_ref.dtype)


def linear_nobias(x2d, w, *, tm, tn, tk):
    M, K = x2d.shape
    N = w.shape[0]
    grid_spec = pltpu.PrefetchScalarGridSpec(
        num_scalar_prefetch=0,
        grid=(M // tm, N // tn, K // tk),
        in_specs=[
            pl.BlockSpec((tm, tk), lambda i, j, k: (i, k)),
            pl.BlockSpec((tn, tk), lambda i, j, k: (j, k)),
        ],
        out_specs=pl.BlockSpec((tm, tn), lambda i, j, k: (i, j)),
        scratch_shapes=[pltpu.VMEM((tm, tn), jnp.float32)],
    )
    return pl.pallas_call(
        _linear_kernel,
        out_shape=jax.ShapeDtypeStruct((M, N), x2d.dtype),
        grid_spec=grid_spec,
        compiler_params=pltpu.CompilerParams(
            dimension_semantics=("parallel", "parallel", "arbitrary"),
            vmem_limit_bytes=48 * 1024 * 1024),
    )(x2d, w)


# ---------------------------------------------------------------------------
# RoPE kernel: applied once per token (hoisted out of attention), folds the
# 1/sqrt(head_dim) softmax scale into Q.
# ---------------------------------------------------------------------------
def _rope_kernel(q_ref, k_ref, cos_ref, sin_ref, qo_ref, ko_ref, *, q_scale):
    cos = cos_ref[...]                        # (ts, hd) f32
    sin = sin_ref[...]
    half = cos.shape[-1] // 2
    c1, c2 = cos[:, :half], cos[:, half:]
    s1, s2 = sin[:, :half], sin[:, half:]

    def rotate(x):                            # x: (ts, hd) f32
        x1 = x[:, :half]
        x2 = x[:, half:]
        # x*cos + rotate_half(x)*sin, rotate_half(x) = [-x2, x1]
        return jnp.concatenate([x1 * c1 - x2 * s1, x2 * c2 + x1 * s2], axis=-1)

    for h in range(q_ref.shape[1]):
        qh = q_ref[:, h, :].astype(jnp.float32)
        qo_ref[:, h, :] = (rotate(qh) * q_scale).astype(qo_ref.dtype)
    for g in range(k_ref.shape[1]):
        kg = k_ref[:, g, :].astype(jnp.float32)
        ko_ref[:, g, :] = rotate(kg).astype(ko_ref.dtype)


def apply_rope(q4, k4, cos, sin, *, q_scale, ts):
    B, S, Hq, hd = q4.shape
    Hkv = k4.shape[2]
    kernel = functools.partial(_rope_kernel, q_scale=q_scale)
    grid_spec = pltpu.PrefetchScalarGridSpec(
        num_scalar_prefetch=0,
        grid=(B, S // ts),
        in_specs=[
            pl.BlockSpec((None, ts, Hq, hd), lambda b, s: (b, s, 0, 0)),
            pl.BlockSpec((None, ts, Hkv, hd), lambda b, s: (b, s, 0, 0)),
            pl.BlockSpec((ts, hd), lambda b, s: (s, 0)),
            pl.BlockSpec((ts, hd), lambda b, s: (s, 0)),
        ],
        out_specs=[
            pl.BlockSpec((None, ts, Hq, hd), lambda b, s: (b, s, 0, 0)),
            pl.BlockSpec((None, ts, Hkv, hd), lambda b, s: (b, s, 0, 0)),
        ],
    )
    return pl.pallas_call(
        kernel,
        out_shape=(jax.ShapeDtypeStruct(q4.shape, q4.dtype),
                   jax.ShapeDtypeStruct(k4.shape, k4.dtype)),
        grid_spec=grid_spec,
        compiler_params=pltpu.CompilerParams(
            dimension_semantics=("parallel", "parallel")),
    )(q4, k4, cos, sin)


# ---------------------------------------------------------------------------
# Flash attention (online softmax), all heads per grid step.
#   grid = (B, q_tiles, kv_tiles); K/V blocks are fetched once per q tile and
#   shared by every query head (GQA amortized); output stays in
#   (B, S, H, head_dim) layout and is lane-dense.
# ---------------------------------------------------------------------------
def _flash_attn_kernel(q_ref, k_ref, v_ref, o_ref, m_sc, l_sc, acc_sc,
                       *, n_rep, causal, tq, tk):
    qi = pl.program_id(1)
    ki = pl.program_id(2)
    n_kv = k_ref.shape[1]
    n_q = q_ref.shape[1]

    @pl.when(ki == 0)
    def _init():
        m_sc[...] = jnp.full(m_sc.shape, -jnp.inf, dtype=jnp.float32)
        l_sc[...] = jnp.zeros(l_sc.shape, dtype=jnp.float32)
        acc_sc[...] = jnp.zeros(acc_sc.shape, dtype=jnp.float32)

    def compute():
        if causal:
            q_pos = qi * tq + jax.lax.broadcasted_iota(jnp.int32, (tq, tk), 0)
            k_pos = ki * tk + jax.lax.broadcasted_iota(jnp.int32, (tq, tk), 1)
            neg = jnp.where(k_pos <= q_pos, 0.0, -1e30).astype(jnp.float32)
        for g in range(n_kv):
            k_g = k_ref[:, g, :]            # (tk, hd) in input dtype (bf16 prod)
            v_g = v_ref[:, g, :]
            for r in range(n_rep):
                h = g * n_rep + r
                q_h = q_ref[:, h, :]        # (tq, hd), pre-rotated & pre-scaled
                # Single full-head_dim contraction, f32 accumulation on MXU.
                s = jax.lax.dot_general(q_h, k_g, _DN_XWT,
                                        preferred_element_type=jnp.float32)
                if causal:
                    s = s + neg
                m_prev = m_sc[:, h:h + 1]
                m_new = jnp.maximum(m_prev, s.max(axis=-1, keepdims=True))
                alpha = jnp.exp(m_prev - m_new)
                p = jnp.exp(s - m_new)
                l_sc[:, h:h + 1] = (alpha * l_sc[:, h:h + 1]
                                    + p.sum(axis=-1, keepdims=True))
                acc_sc[:, h, :] = alpha * acc_sc[:, h, :] + jnp.dot(
                    p.astype(v_g.dtype), v_g,
                    preferred_element_type=jnp.float32)
                m_sc[:, h:h + 1] = m_new

    if causal:
        # Skip KV blocks lying entirely above the diagonal (~2x work saved).
        pl.when(ki * tk <= qi * tq + (tq - 1))(compute)
    else:
        compute()

    @pl.when(ki == pl.num_programs(2) - 1)
    def _fin():
        # EUP approx reciprocal + one Newton step (accurate to f32 round-off,
        # no VPU divide).  l > 0 always holds for causal / unmasked inputs.
        l = l_sc[...]
        inv = pl.reciprocal(l, approx=True)
        inv = inv * (2.0 - l * inv)
        for h in range(n_q):
            o_ref[:, h, :] = (acc_sc[:, h, :] * inv[:, h:h + 1]
                              ).astype(o_ref.dtype)


def flash_attention(q4, k4, v4, *, n_rep, is_causal, tq, tk):
    B, S, Hq, hd = q4.shape
    Hkv = k4.shape[2]
    kernel = functools.partial(_flash_attn_kernel, n_rep=n_rep,
                               causal=is_causal, tq=tq, tk=tk)
    grid_spec = pltpu.PrefetchScalarGridSpec(
        num_scalar_prefetch=0,
        grid=(B, S // tq, S // tk),
        in_specs=[
            pl.BlockSpec((None, tq, Hq, hd), lambda b, qi, ki: (b, qi, 0, 0)),
            pl.BlockSpec((None, tk, Hkv, hd), lambda b, qi, ki: (b, ki, 0, 0)),
            pl.BlockSpec((None, tk, Hkv, hd), lambda b, qi, ki: (b, ki, 0, 0)),
        ],
        out_specs=pl.BlockSpec((None, tq, Hq, hd),
                               lambda b, qi, ki: (b, qi, 0, 0)),
        scratch_shapes=[
            pltpu.VMEM((tq, Hq), jnp.float32),       # running max  (per head)
            pltpu.VMEM((tq, Hq), jnp.float32),       # running denom
            pltpu.VMEM((tq, Hq, hd), jnp.float32),   # output accumulator
        ],
    )
    return pl.pallas_call(
        kernel,
        out_shape=jax.ShapeDtypeStruct((B, S, Hq, hd), q4.dtype),
        grid_spec=grid_spec,
        compiler_params=pltpu.CompilerParams(
            dimension_semantics=("parallel", "parallel", "arbitrary"),
            vmem_limit_bytes=32 * 1024 * 1024),
    )(q4, k4, v4)


# ---------------------------------------------------------------------------
# Full module forward
# ---------------------------------------------------------------------------
def multi_head_attention(x, wq, wk, wv, wo, *, n_heads, n_kv_heads=None,
                         is_causal=False, rope_base=10000.0,
                         attn_tq=None, attn_tk=None,
                         proj_tk=None, proj_tn=None):
    """Forward of the PyTorch MultiHeadAttention module (inference).

    x : (B, S, d_model)
    wq: (n_heads*head_dim,    d_model)   -- nn.Linear weight layout (out, in)
    wk: (n_kv_heads*head_dim, d_model)
    wv: (n_kv_heads*head_dim, d_model)
    wo: (d_model, n_heads*head_dim)
    """
    B, S, dm = x.shape
    if n_kv_heads is None:
        n_kv_heads = n_heads
    hd = dm // n_heads
    n_rep = n_heads // n_kv_heads
    q_out = n_heads * hd

    M = B * S
    tm = _row_tile(M, 256)
    tkk = proj_tk or _lane_tile(dm, 512)

    x2d = x.reshape(M, dm)

    # Fused Q/K/V projection (single pass over x, weights tiled along d_model).
    q2d, k2d, v2d = qkv_projection(x2d, wq, wk, wv, tm=tm, tk=tkk)

    # Free reshapes only -- activations stay in (B, S, heads, head_dim) layout
    # through RoPE and attention (no HBM transposes anywhere).
    q4 = q2d.reshape(B, S, n_heads, hd)
    k4 = k2d.reshape(B, S, n_kv_heads, hd)
    v4 = v2d.reshape(B, S, n_kv_heads, hd)

    # RoPE tables (tiny (S, hd) tensors).
    inv_freq = 1.0 / (rope_base ** (jnp.arange(0, hd, 2, dtype=jnp.float32) / hd))
    t = jnp.arange(S, dtype=jnp.float32)
    freqs = t[:, None] * inv_freq[None, :]
    emb = jnp.concatenate([freqs, freqs], axis=-1)          # (S, hd)
    cos = jnp.cos(emb)
    sin = jnp.sin(emb)

    # RoPE once per token; softmax scale folded into Q.
    ts = _row_tile(S, 256)
    q4, k4 = apply_rope(q4, k4, cos, sin, q_scale=1.0 / math.sqrt(hd), ts=ts)

    # Fused GQA flash attention.
    tq = attn_tq or _row_tile(S, 128)
    tk = attn_tk or _row_tile(S, 256)
    o4 = flash_attention(q4, k4, v4, n_rep=n_rep, is_causal=is_causal,
                         tq=tq, tk=tk)

    o2d = o4.reshape(M, q_out)
    tn = proj_tn or _lane_tile(dm, 256)
    tko = proj_tk or _lane_tile(q_out, 512)
    y2d = linear_nobias(o2d, wo, tm=tm, tn=tn, tk=tko)
    return y2d.reshape(B, S, dm)


# ---------------------------------------------------------------------------
# Pure-JAX reference (mirrors the PyTorch forward, eval mode)
# ---------------------------------------------------------------------------
def mha_ref(x, wq, wk, wv, wo, *, n_heads, n_kv_heads=None, is_causal=False,
            rope_base=10000.0):
    B, S, dm = x.shape
    if n_kv_heads is None:
        n_kv_heads = n_heads
    hd = dm // n_heads
    n_rep = n_heads // n_kv_heads

    q = (x @ wq.T).reshape(B, S, n_heads, hd).transpose(0, 2, 1, 3)
    k = (x @ wk.T).reshape(B, S, n_kv_heads, hd).transpose(0, 2, 1, 3)
    v = (x @ wv.T).reshape(B, S, n_kv_heads, hd).transpose(0, 2, 1, 3)

    inv_freq = 1.0 / (rope_base ** (jnp.arange(0, hd, 2, dtype=jnp.float32) / hd))
    t = jnp.arange(S, dtype=jnp.float32)
    freqs = t[:, None] * inv_freq[None, :]
    emb = jnp.concatenate([freqs, freqs], axis=-1)
    cos = jnp.cos(emb)[None, None]
    sin = jnp.sin(emb)[None, None]

    def rotate_half(a):
        return jnp.concatenate([-a[..., hd // 2:], a[..., :hd // 2]], axis=-1)

    q = q * cos + rotate_half(q) * sin
    k = k * cos + rotate_half(k) * sin

    k = jnp.repeat(k, n_rep, axis=1)
    v = jnp.repeat(v, n_rep, axis=1)

    scores = jnp.einsum("bhqd,bhkd->bhqk", q, k) / math.sqrt(hd)
    if is_causal:
        causal = jnp.tril(jnp.ones((S, S), dtype=bool))
        scores = jnp.where(causal[None, None], scores, -jnp.inf)
    attn = jax.nn.softmax(scores, axis=-1)
    out = jnp.einsum("bhqk,bhkd->bhqd", attn, v)
    out = out.transpose(0, 2, 1, 3).reshape(B, S, n_heads * hd)
    return out @ wo.T


if __name__ == "__main__":
    batch, seq, d_model = 2, 128, 256
    n_heads, n_kv_heads = 4, 2            # GQA: n_rep = 2
    head_dim = d_model // n_heads         # 64

    key = jax.random.PRNGKey(0)
    kx, kq, kk, kv_, ko = jax.random.split(key, 5)

    s_in = (1.0 / d_model) ** 0.5
    x = jax.random.normal(kx, (batch, seq, d_model), dtype=jnp.float32)
    wq = jax.random.normal(kq, (n_heads * head_dim, d_model), jnp.float32) * s_in
    wk = jax.random.normal(kk, (n_kv_heads * head_dim, d_model), jnp.float32) * s_in
    wv = jax.random.normal(kv_, (n_kv_heads * head_dim, d_model), jnp.float32) * s_in
    wo = jax.random.normal(ko, (d_model, n_heads * head_dim), jnp.float32) * s_in

    # A) non-causal, default tiles (module default: mask=None, eval mode).
    y = multi_head_attention(x, wq, wk, wv, wo, n_heads=n_heads,
                             n_kv_heads=n_kv_heads, is_causal=False)
    y = jax.block_until_ready(y)
    y_ref = mha_ref(x, wq, wk, wv, wo, n_heads=n_heads,
                    n_kv_heads=n_kv_heads, is_causal=False)
    assert y.shape == (batch, seq, d_model)
    assert jnp.allclose(y, y_ref, atol=2e-3, rtol=2e-3), "non-causal mismatch"

    # B) non-causal, small tiles: exercises multi-block online softmax and the
    #    K-axis accumulation / N tiling of the projection kernels.
    y_b = multi_head_attention(x, wq, wk, wv, wo, n_heads=n_heads,
                               n_kv_heads=n_kv_heads, is_causal=False,
                               attn_tq=64, attn_tk=32,
                               proj_tk=128, proj_tn=128)
    y_b = jax.block_until_ready(y_b)
    assert jnp.allclose(y_b, y_ref, atol=2e-3, rtol=2e-3), "tiled mismatch"

    # C) causal, multi-block (exercises the fully-masked-block skip).
    y_c = multi_head_attention(x, wq, wk, wv, wo, n_heads=n_heads,
                               n_kv_heads=n_kv_heads, is_causal=True,
                               attn_tq=32, attn_tk=32)
    y_c = jax.block_until_ready(y_c)
    y_c_ref = mha_ref(x, wq, wk, wv, wo, n_heads=n_heads,
                      n_kv_heads=n_kv_heads, is_causal=True)
    assert jnp.allclose(y_c, y_c_ref, atol=2e-3, rtol=2e-3), "causal mismatch"

    print("KERNEL_OK")
</pallas_src>

<mosaic_0001>
module attributes {stable_mosaic.version = 11 : i64} {
  func.func @_qkv_proj_kernel(%arg0: i32, %arg1: i32, %arg2: memref<256x256xf32, #tpu.memory_space<vmem>>, %arg3: memref<256x256xf32, #tpu.memory_space<vmem>>, %arg4: memref<128x256xf32, #tpu.memory_space<vmem>>, %arg5: memref<128x256xf32, #tpu.memory_space<vmem>>, %arg6: memref<256x256xf32, #tpu.memory_space<vmem>>, %arg7: memref<256x128xf32, #tpu.memory_space<vmem>>, %arg8: memref<256x128xf32, #tpu.memory_space<vmem>>, %arg9: memref<256x256xf32, #tpu.memory_space<vmem>>, %arg10: memref<256x128xf32, #tpu.memory_space<vmem>>, %arg11: memref<256x128xf32, #tpu.memory_space<vmem>>) attributes {dimension_semantics = [#tpu.dimension_semantics<parallel>, #tpu.dimension_semantics<arbitrary>], iteration_bounds = array<i64: 1, 1>, scalar_prefetch = 0 : i64, scratch_operands = 3 : i64, tpu.core_type = #tpu.core_type<tc>, window_params = [{transform_indices = @transform_0, window_bounds = array<i64: 256, 256>}, {transform_indices = @transform_1, window_bounds = array<i64: 256, 256>}, {transform_indices = @transform_2, window_bounds = array<i64: 128, 256>}, {transform_indices = @transform_3, window_bounds = array<i64: 128, 256>}, {transform_indices = @transform_4, window_bounds = array<i64: 256, 256>}, {transform_indices = @transform_5, window_bounds = array<i64: 256, 128>}, {transform_indices = @transform_6, window_bounds = array<i64: 256, 128>}]} {
    %c0_i32 = arith.constant 0 : i32
    %0 = arith.cmpi eq, %arg1, %c0_i32 : i32
    %1 = arith.extui %0 : i1 to i32
    %c0_i32_0 = arith.constant 0 : i32
    %2 = arith.cmpi ne, %1, %c0_i32_0 : i32
    scf.if %2 {
      %cst_24 = arith.constant 0.000000e+00 : f32
      %22 = vector.broadcast %cst_24 : f32 to vector<256x256xf32>
      %c0_25 = arith.constant 0 : index
      %c0_26 = arith.constant 0 : index
      %23 = vector.load %arg9[%c0_25, %c0_26] : memref<256x256xf32, #tpu.memory_space<vmem>>, vector<256x256xf32>
      tpu.vector_store %arg9[%c0_25, %c0_26], %22 {strides = array<i32>} : memref<256x256xf32, #tpu.memory_space<vmem>>, vector<256x256xf32>,
      %cst_27 = arith.constant 0.000000e+00 : f32
      %24 = vector.broadcast %cst_27 : f32 to vector<256x128xf32>
      %c0_28 = arith.constant 0 : index
      %c0_29 = arith.constant 0 : index
      %25 = vector.load %arg10[%c0_28, %c0_29] : memref<256x128xf32, #tpu.memory_space<vmem>>, vector<256x128xf32>
      tpu.vector_store %arg10[%c0_28, %c0_29], %24 {strides = array<i32>} : memref<256x128xf32, #tpu.memory_space<vmem>>, vector<256x128xf32>,
      %cst_30 = arith.constant 0.000000e+00 : f32
      %26 = vector.broadcast %cst_30 : f32 to vector<256x128xf32>
      %c0_31 = arith.constant 0 : index
      %c0_32 = arith.constant 0 : index
      %27 = vector.load %arg11[%c0_31, %c0_32] : memref<256x128xf32, #tpu.memory_space<vmem>>, vector<256x128xf32>
      tpu.vector_store %arg11[%c0_31, %c0_32], %26 {strides = array<i32>} : memref<256x128xf32, #tpu.memory_space<vmem>>, vector<256x128xf32>,
    } else {
    }
    %c0 = arith.constant 0 : index
    %c0_1 = arith.constant 0 : index
    %3 = vector.load %arg2[%c0, %c0_1] : memref<256x256xf32, #tpu.memory_space<vmem>>, vector<256x256xf32>
    %c0_2 = arith.constant 0 : index
    %c0_3 = arith.constant 0 : index
    %4 = vector.load %arg9[%c0_2, %c0_3] : memref<256x256xf32, #tpu.memory_space<vmem>>, vector<256x256xf32>
    %c0_4 = arith.constant 0 : index
    %c0_5 = arith.constant 0 : index
    %5 = vector.load %arg3[%c0_4, %c0_5] : memref<256x256xf32, #tpu.memory_space<vmem>>, vector<256x256xf32>
    %cst = arith.constant dense<0.000000e+00> : vector<256x256xf32>
    %6 = tpu.matmul %3, %5, %cst {dimension_numbers = #tpu.dot_dimension_numbers<[1], [1], [0], [0], [0, 0, 1, 0], [], []>} : vector<256x256xf32>, vector<256x256xf32>, vector<256x256xf32> -> vector<256x256xf32>
    %7 = arith.addf %4, %6 : vector<256x256xf32>
    %c0_6 = arith.constant 0 : index
    %c0_7 = arith.constant 0 : index
    %8 = vector.load %arg9[%c0_6, %c0_7] : memref<256x256xf32, #tpu.memory_space<vmem>>, vector<256x256xf32>
    tpu.vector_store %arg9[%c0_6, %c0_7], %7 {strides = array<i32>} : memref<256x256xf32, #tpu.memory_space<vmem>>, vector<256x256xf32>,
    %c0_8 = arith.constant 0 : index
    %c0_9 = arith.constant 0 : index
    %9 = vector.load %arg10[%c0_8, %c0_9] : memref<256x128xf32, #tpu.memory_space<vmem>>, vector<256x128xf32>
    %c0_10 = arith.constant 0 : index
    %c0_11 = arith.constant 0 : index
    %10 = vector.load %arg4[%c0_10, %c0_11] : memref<128x256xf32, #tpu.memory_space<vmem>>, vector<128x256xf32>
    %cst_12 = arith.constant dense<0.000000e+00> : vector<256x128xf32>
    %11 = tpu.matmul %3, %10, %cst_12 {dimension_numbers = #tpu.dot_dimension_numbers<[1], [1], [0], [0], [0, 0, 1, 0], [], []>} : vector<256x256xf32>, vector<128x256xf32>, vector<256x128xf32> -> vector<256x128xf32>
    %12 = arith.addf %9, %11 : vector<256x128xf32>
    %c0_13 = arith.constant 0 : index
    %c0_14 = arith.constant 0 : index
    %13 = vector.load %arg10[%c0_13, %c0_14] : memref<256x128xf32, #tpu.memory_space<vmem>>, vector<256x128xf32>
    tpu.vector_store %arg10[%c0_13, %c0_14], %12 {strides = array<i32>} : memref<256x128xf32, #tpu.memory_space<vmem>>, vector<256x128xf32>,
    %c0_15 = arith.constant 0 : index
    %c0_16 = arith.constant 0 : index
    %14 = vector.load %arg11[%c0_15, %c0_16] : memref<256x128xf32, #tpu.memory_space<vmem>>, vector<256x128xf32>
    %c0_17 = arith.constant 0 : index
    %c0_18 = arith.constant 0 : index
    %15 = vector.load %arg5[%c0_17, %c0_18] : memref<128x256xf32, #tpu.memory_space<vmem>>, vector<128x256xf32>
    %cst_19 = arith.constant dense<0.000000e+00> : vector<256x128xf32>
    %16 = tpu.matmul %3, %15, %cst_19 {dimension_numbers = #tpu.dot_dimension_numbers<[1], [1], [0], [0], [0, 0, 1, 0], [], []>} : vector<256x256xf32>, vector<128x256xf32>, vector<256x128xf32> -> vector<256x128xf32>
    %17 = arith.addf %14, %16 : vector<256x128xf32>
    %c0_20 = arith.constant 0 : index
    %c0_21 = arith.constant 0 : index
    %18 = vector.load %arg11[%c0_20, %c0_21] : memref<256x128xf32, #tpu.memory_space<vmem>>, vector<256x128xf32>
    tpu.vector_store %arg11[%c0_20, %c0_21], %17 {strides = array<i32>} : memref<256x128xf32, #tpu.memory_space<vmem>>, vector<256x128xf32>,
    %c0_i32_22 = arith.constant 0 : i32
    %19 = arith.cmpi eq, %arg1, %c0_i32_22 : i32
    %20 = arith.extui %19 : i1 to i32
    %c0_i32_23 = arith.constant 0 : i32
    %21 = arith.cmpi ne, %20, %c0_i32_23 : i32
    scf.if %21 {
      %c0_24 = arith.constant 0 : index
      %c0_25 = arith.constant 0 : index
      %22 = vector.load %arg9[%c0_24, %c0_25] : memref<256x256xf32, #tpu.memory_space<vmem>>, vector<256x256xf32>
      %c0_26 = arith.constant 0 : index
      %c0_27 = arith.constant 0 : index
      %23 = vector.load %arg6[%c0_26, %c0_27] : memref<256x256xf32, #tpu.memory_space<vmem>>, vector<256x256xf32>
      tpu.vector_store %arg6[%c0_26, %c0_27], %22 {strides = array<i32>} : memref<256x256xf32, #tpu.memory_space<vmem>>, vector<256x256xf32>,
      %c0_28 = arith.constant 0 : index
      %c0_29 = arith.constant 0 : index
      %24 = vector.load %arg10[%c0_28, %c0_29] : memref<256x128xf32, #tpu.memory_space<vmem>>, vector<256x128xf32>
      %c0_30 = arith.constant 0 : index
      %c0_31 = arith.constant 0 : index
      %25 = vector.load %arg7[%c0_30, %c0_31] : memref<256x128xf32, #tpu.memory_space<vmem>>, vector<256x128xf32>
      tpu.vector_store %arg7[%c0_30, %c0_31], %24 {strides = array<i32>} : memref<256x128xf32, #tpu.memory_space<vmem>>, vector<256x128xf32>,
      %c0_32 = arith.constant 0 : index
      %c0_33 = arith.constant 0 : index
      %26 = vector.load %arg11[%c0_32, %c0_33] : memref<256x128xf32, #tpu.memory_space<vmem>>, vector<256x128xf32>
      %c0_34 = arith.constant 0 : index
      %c0_35 = arith.constant 0 : index
      %27 = vector.load %arg8[%c0_34, %c0_35] : memref<256x128xf32, #tpu.memory_space<vmem>>, vector<256x128xf32>
      tpu.vector_store %arg8[%c0_34, %c0_35], %26 {strides = array<i32>} : memref<256x128xf32, #tpu.memory_space<vmem>>, vector<256x128xf32>,
    } else {
    }
    return
  }
  func.func @transform_0(%arg0: i32, %arg1: i32) -> (i32, i32) {
    %c0_i32 = arith.constant 0 : i32
    return %arg0, %arg1 : i32, i32
  }
  func.func @transform_1(%arg0: i32, %arg1: i32) -> (i32, i32) {
    %c0_i32 = arith.constant 0 : i32
    %c0_i32_0 = arith.constant 0 : i32
    return %c0_i32, %arg1 : i32, i32
  }
  func.func @transform_2(%arg0: i32, %arg1: i32) -> (i32, i32) {
    %c0_i32 = arith.constant 0 : i32
    %c0_i32_0 = arith.constant 0 : i32
    return %c0_i32, %arg1 : i32, i32
  }
  func.func @transform_3(%arg0: i32, %arg1: i32) -> (i32, i32) {
    %c0_i32 = arith.constant 0 : i32
    %c0_i32_0 = arith.constant 0 : i32
    return %c0_i32, %arg1 : i32, i32
  }
  func.func @transform_4(%arg0: i32, %arg1: i32) -> (i32, i32) {
    %c0_i32 = arith.constant 0 : i32
    %c0_i32_0 = arith.constant 0 : i32
    return %arg0, %c0_i32 : i32, i32
  }
  func.func @transform_5(%arg0: i32, %arg1: i32) -> (i32, i32) {
    %c0_i32 = arith.constant 0 : i32
    %c0_i32_0 = arith.constant 0 : i32
    return %arg0, %c0_i32 : i32, i32
  }
  func.func @transform_6(%arg0: i32, %arg1: i32) -> (i32, i32) {
    %c0_i32 = arith.constant 0 : i32
    %c0_i32_0 = arith.constant 0 : i32
    return %arg0, %c0_i32 : i32, i32
  }
}

</mosaic_0001>

<llo_original>
// kernel: tpu_custom_call.1
$region0: #{tpu_custom_call.1}
  #allocation0 [shape = 'u32[]', space=smem, size = 0x4, offset = 0x4, fixed_abs, tag = 'smem constant byte address 0x4 - core index']
  #allocation1 [shape = 'u32[144,128]{1,0:T(1,128)}', space=vmem, size = 0x12000, scoped, tag = 'internal scratch']
  #allocation2 [shape = 'f32[256,256]{1,0:T(8,128)}', space=vmem, size = 0x40000, scoped, tag = 'scratch operand']
  #allocation3 [shape = 'f32[256,128]{1,0:T(8,128)}', space=vmem, size = 0x20000, scoped, tag = 'scratch operand']
  #allocation4 [shape = 'f32[256,128]{1,0:T(8,128)}', space=vmem, size = 0x20000, scoped, tag = 'scratch operand']
  %s0 = inlined_call_operand.hbm [shape: f32[256,256], index: 0, kind: input, shape index: {}]
  %s1 = inlined_call_operand.hbm [shape: f32[256,256], index: 1, kind: input, shape index: {}]
  %s2 = inlined_call_operand.hbm [shape: f32[128,256], index: 2, kind: input, shape index: {}]
  %s3 = inlined_call_operand.hbm [shape: f32[128,256], index: 3, kind: input, shape index: {}]
  %s4 = inlined_call_operand.hbm [shape: f32[256,256], index: 4, kind: output, shape index: {0}]
  %s5 = inlined_call_operand.hbm [shape: f32[256,128], index: 5, kind: output, shape index: {1}]
  %s6 = inlined_call_operand.hbm [shape: f32[256,128], index: 6, kind: output, shape index: {2}]
  %7 = xla_tuple %s4, %s5, %s6
  %s8 = sld [smem:[#allocation0]]
  $region66: #{tpu_custom_call.1} parent=0
    _
  %s10 = ssub.s32 1, %s8
  %s11 = scalar_select 0, %s10, %s8
  $region1: #{tpu_custom_call.1} parent=0
    #allocation5 [shape = 'u8[262144]{0}', space=vmem, size = 0x40000, scoped, tag = 'input window, operand 0, single buffered']
    #allocation6 [shape = 's32[1]{0}', space=sflag, size = 0x4, scoped, tag = 'scoped memory for tpu_custom_call.1']
    #allocation7 [shape = 's32[1]{0}', space=sflag, size = 0x4, scoped, tag = 'scoped memory for tpu_custom_call.1']
    #allocation8 [shape = 'u8[262144]{0}', space=vmem, size = 0x40000, scoped, tag = 'input window, operand 1, single buffered']
    #allocation9 [shape = 's32[1]{0}', space=sflag, size = 0x4, scoped, tag = 'scoped memory for tpu_custom_call.1']
    #allocation10 [shape = 'u8[131072]{0}', space=vmem, size = 0x20000, scoped, tag = 'input window, operand 2, single buffered']
    #allocation11 [shape = 'u8[131072]{0}', space=vmem, size = 0x20000, scoped, tag = 'input window, operand 3, single buffered']
    #allocation12 [shape = 's32[1]{0}', space=sflag, size = 0x4, scoped, tag = 'scoped memory for tpu_custom_call.1']
    #allocation13 [shape = 'u8[262144]{0}', space=vmem, size = 0x40000, scoped, tag = 'output window, operand 0, single buffered']
    #allocation14 [shape = 'u8[131072]{0}', space=vmem, size = 0x20000, scoped, tag = 'output window, operand 1, single buffered']
    #allocation15 [shape = 's32[1]{0}', space=sflag, size = 0x4, scoped, tag = 'scoped memory for tpu_custom_call.1']
    #allocation16 [shape = 'u8[131072]{0}', space=vmem, size = 0x20000, scoped, tag = 'output window, operand 2, single buffered']
    %12 = vsyncpa [#allocation6], 0
    %13 = vsyncpa [#allocation9], 0
    %14 = vsyncpa [#allocation12], 0
    %15 = vsyncpa [#allocation7], 0
    %16 = vsyncpa [#allocation15], 0
    // Predicated region
    $region2: #{tpu_custom_call.1} parent=1 // pred_check
      _
    $region3: #{tpu_custom_call.1} parent=1 // pred_check_branch
      %18 = sbr.rel (0) target = $region5
    $region4: #{tpu_custom_call.1} parent=1 // pred_region
      %s20 = ssub.s32 8192, 8192
      %21 = vsyncadd [#allocation6], %s20
      %s22 = sshll.u32 [#allocation5], 4
      %s23 = int_to_ptr.vmem [resolvable:$true] %s22
      %28 = dma.hbm_to_vmem [thread:$0]  %s0, 8192, %s23, [#allocation6], 256, 256, 16
    $region5: #{tpu_custom_call.1} parent=1 // pred_fallthru
      _
    // Predicated region
    $region6: #{tpu_custom_call.1} parent=1 // pred_check
      _
    $region7: #{tpu_custom_call.1} parent=1 // pred_check_branch
      %30 = sbr.rel (0) target = $region9
    $region8: #{tpu_custom_call.1} parent=1 // pred_region
      %s32 = ssub.s32 8192, 8192
      %33 = vsyncadd [#allocation9], %s32
      %s34 = sshll.u32 [#allocation8], 4
      %s35 = int_to_ptr.vmem [resolvable:$true] %s34
      %40 = dma.hbm_to_vmem [thread:$0]  %s1, 8192, %s35, [#allocation9], 256, 256, 16
    $region9: #{tpu_custom_call.1} parent=1 // pred_fallthru
      _
    // Predicated region
    $region10: #{tpu_custom_call.1} parent=1 // pred_check
      _
    $region11: #{tpu_custom_call.1} parent=1 // pred_check_branch
      %42 = sbr.rel (0) target = $region13
    $region12: #{tpu_custom_call.1} parent=1 // pred_region
      %s44 = ssub.s32 4096, 4096
      %45 = vsyncadd [#allocation9], %s44
      %s46 = sshll.u32 [#allocation10], 4
      %s47 = int_to_ptr.vmem [resolvable:$true] %s46
      %52 = dma.hbm_to_vmem [thread:$0]  %s2, 4096, %s47, [#allocation9], 256, 256, 16
    $region13: #{tpu_custom_call.1} parent=1 // pred_fallthru
      _
    // Predicated region
    $region14: #{tpu_custom_call.1} parent=1 // pred_check
      _
    $region15: #{tpu_custom_call.1} parent=1 // pred_check_branch
      %54 = sbr.rel (0) target = $region17
    $region16: #{tpu_custom_call.1} parent=1 // pred_region
      %s56 = ssub.s32 4096, 4096
      %57 = vsyncadd [#allocation12], %s56
      %s58 = sshll.u32 [#allocation11], 4
      %s59 = int_to_ptr.vmem [resolvable:$true] %s58
      %64 = dma.hbm_to_vmem [thread:$0]  %s3, 4096, %s59, [#allocation12], 256, 256, 16
    $region17: #{tpu_custom_call.1} parent=1 // pred_fallthru
      _
    // Predicated region
    $region18: #{tpu_custom_call.1} parent=1 // pred_check
      _
    $region19: #{tpu_custom_call.1} parent=1 // pred_check_branch
      %66 = sbr.rel (0) target = $region21
    $region20: #{tpu_custom_call.1} parent=1 // pred_region
      %67 = dma.done [#allocation6], 8192
    $region21: #{tpu_custom_call.1} parent=1 // pred_fallthru
      _
    // Predicated region
    $region22: #{tpu_custom_call.1} parent=1 // pred_check
      _
    $region23: #{tpu_custom_call.1} parent=1 // pred_check_branch
      %69 = sbr.rel (0) target = $region25
    $region24: #{tpu_custom_call.1} parent=1 // pred_region
      %70 = dma.done [#allocation9], 8192
    $region25: #{tpu_custom_call.1} parent=1 // pred_fallthru
      _
    // Predicated region
    $region26: #{tpu_custom_call.1} parent=1 // pred_check
      _
    $region27: #{tpu_custom_call.1} parent=1 // pred_check_branch
      %72 = sbr.rel (0) target = $region29
    $region28: #{tpu_custom_call.1} parent=1 // pred_region
      %73 = dma.done [#allocation9], 4096
    $region29: #{tpu_custom_call.1} parent=1 // pred_fallthru
      _
    // Predicated region
    $region30: #{tpu_custom_call.1} parent=1 // pred_check
      _
    $region31: #{tpu_custom_call.1} parent=1 // pred_check_branch
      %75 = sbr.rel (0) target = $region33
    $region32: #{tpu_custom_call.1} parent=1 // pred_region
      %76 = dma.done [#allocation12], 4096
    $region33: #{tpu_custom_call.1} parent=1 // pred_fallthru
      _
    %p77 = scmp.eq.s32.totalorder 0, 0
    // Predicated region
    $region34: #{tpu_custom_call.1} parent=1 // pred_check
      %p78 = pneg %p77
    $region35: #{tpu_custom_call.1} parent=1 // pred_check_branch
      %80 = sbr.rel (%p78) target = $region37
    $region36: #{tpu_custom_call.1} parent=1 // pred_region
      %81 = vst [vmem:[#allocation2] sm:$0xff] 0.0
      %82 = vst [vmem:[#allocation2 + $0x8] sm:$0xff] 0.0
      %83 = vst [vmem:[#allocation2 + $0x10] sm:$0xff] 0.0
      %84 = vst [vmem:[#allocation2 + $0x18] sm:$0xff] 0.0
      %85 = vst [vmem:[#allocation2 + $0x20] sm:$0xff] 0.0
      %86 = vst [vmem:[#allocation2 + $0x28] sm:$0xff] 0.0
      %87 = vst [vmem:[#allocation2 + $0x30] sm:$0xff] 0.0
      %88 = vst [vmem:[#allocation2 + $0x38] sm:$0xff] 0.0
      %89 = vst [vmem:[#allocation2 + $0x40] sm:$0xff] 0.0
      %90 = vst [vmem:[#allocation2 + $0x48] sm:$0xff] 0.0
      %91 = vst [vmem:[#allocation2 + $0x50] sm:$0xff] 0.0
      %92 = vst [vmem:[#allocation2 + $0x58] sm:$0xff] 0.0
      %93 = vst [vmem:[#allocation2 + $0x60] sm:$0xff] 0.0
      %94 = vst [vmem:[#allocation2 + $0x68] sm:$0xff] 0.0
      %95 = vst [vmem:[#allocation2 + $0x70] sm:$0xff] 0.0
      %96 = vst [vmem:[#allocation2 + $0x78] sm:$0xff] 0.0
      %97 = vst [vmem:[#allocation2 + $0x80] sm:$0xff] 0.0
      %98 = vst [vmem:[#allocation2 + $0x88] sm:$0xff] 0.0
      %99 = vst [vmem:[#allocation2 + $0x90] sm:$0xff] 0.0
      %100 = vst [vmem:[#allocation2 + $0x98] sm:$0xff] 0.0
      %101 = vst [vmem:[#allocation2 + $0xa0] sm:$0xff] 0.0
      %102 = vst [vmem:[#allocation2 + $0xa8] sm:$0xff] 0.0
      %103 = vst [vmem:[#allocation2 + $0xb0] sm:$0xff] 0.0
      %104 = vst [vmem:[#allocation2 + $0xb8] sm:$0xff] 0.0
      %105 = vst [vmem:[#allocation2 + $0xc0] sm:$0xff] 0.0
      %106 = vst [vmem:[#allocation2 + $0xc8] sm:$0xff] 0.0
      %107 = vst [vmem:[#allocation2 + $0xd0] sm:$0xff] 0.0
      %108 = vst [vmem:[#allocation2 + $0xd8] sm:$0xff] 0.0
      %109 = vst [vmem:[#allocation2 + $0xe0] sm:$0xff] 0.0
      %110 = vst [vmem:[#allocation2 + $0xe8] sm:$0xff] 0.0
      %111 = vst [vmem:[#allocation2 + $0xf0] sm:$0xff] 0.0
      %112 = vst [vmem:[#allocation2 + $0xf8] sm:$0xff] 0.0
      %113 = vst [vmem:[#allocation2 + $0x100] sm:$0xff] 0.0
      %114 = vst [vmem:[#allocation2 + $0x108] sm:$0xff] 0.0
      %115 = vst [vmem:[#allocation2 + $0x110] sm:$0xff] 0.0
      %116 = vst [vmem:[#allocation2 + $0x118] sm:$0xff] 0.0
      %117 = vst [vmem:[#allocation2 + $0x120] sm:$0xff] 0.0
      %118 = vst [vmem:[#allocation2 + $0x128] sm:$0xff] 0.0
      %119 = vst [vmem:[#allocation2 + $0x130] sm:$0xff] 0.0
      %120 = vst [vmem:[#allocation2 + $0x138] sm:$0xff] 0.0
      %121 = vst [vmem:[#allocation2 + $0x140] sm:$0xff] 0.0
      %122 = vst [vmem:[#allocation2 + $0x148] sm:$0xff] 0.0
      %123 = vst [vmem:[#allocation2 + $0x150] sm:$0xff] 0.0
      %124 = vst [vmem:[#allocation2 + $0x158] sm:$0xff] 0.0
      %125 = vst [vmem:[#allocation2 + $0x160] sm:$0xff] 0.0
      %126 = vst [vmem:[#allocation2 + $0x168] sm:$0xff] 0.0
      %127 = vst [vmem:[#allocation2 + $0x170] sm:$0xff] 0.0
      %128 = vst [vmem:[#allocation2 + $0x178] sm:$0xff] 0.0
      %129 = vst [vmem:[#allocation2 + $0x180] sm:$0xff] 0.0
      %130 = vst [vmem:[#allocation2 + $0x188] sm:$0xff] 0.0
      %131 = vst [vmem:[#allocation2 + $0x190] sm:$0xff] 0.0
      %132 = vst [vmem:[#allocation2 + $0x198] sm:$0xff] 0.0
      %133 = vst [vmem:[#allocation2 + $0x1a0] sm:$0xff] 0.0
      %134 = vst [vmem:[#allocation2 + $0x1a8] sm:$0xff] 0.0
      %135 = vst [vmem:[#allocation2 + $0x1b0] sm:$0xff] 0.0
      %136 = vst [vmem:[#allocation2 + $0x1b8] sm:$0xff] 0.0
      %137 = vst [vmem:[#allocation2 + $0x1c0] sm:$0xff] 0.0
      %138 = vst [vmem:[#allocation2 + $0x1c8] sm:$0xff] 0.0
      %139 = vst [vmem:[#allocation2 + $0x1d0] sm:$0xff] 0.0
      %140 = vst [vmem:[#allocation2 + $0x1d8] sm:$0xff] 0.0
      %141 = vst [vmem:[#allocation2 + $0x1e0] sm:$0xff] 0.0
      %142 = vst [vmem:[#allocation2 + $0x1e8] sm:$0xff] 0.0
      %143 = vst [vmem:[#allocation2 + $0x1f0] sm:$0xff] 0.0
      %144 = vst [vmem:[#allocation2 + $0x1f8] sm:$0xff] 0.0
      %145 = vst [vmem:[#allocation3] sm:$0xff] 0.0
      %146 = vst [vmem:[#allocation3 + $0x8] sm:$0xff] 0.0
      %147 = vst [vmem:[#allocation3 + $0x10] sm:$0xff] 0.0
      %148 = vst [vmem:[#allocation3 + $0x18] sm:$0xff] 0.0
      %149 = vst [vmem:[#allocation3 + $0x20] sm:$0xff] 0.0
      %150 = vst [vmem:[#allocation3 + $0x28] sm:$0xff] 0.0
      %151 = vst [vmem:[#allocation3 + $0x30] sm:$0xff] 0.0
      %152 = vst [vmem:[#allocation3 + $0x38] sm:$0xff] 0.0
      %153 = vst [vmem:[#allocation3 + $0x40] sm:$0xff] 0.0
      %154 = vst [vmem:[#allocation3 + $0x48] sm:$0xff] 0.0
      %155 = vst [vmem:[#allocation3 + $0x50] sm:$0xff] 0.0
      %156 = vst [vmem:[#allocation3 + $0x58] sm:$0xff] 0.0
      %157 = vst [vmem:[#allocation3 + $0x60] sm:$0xff] 0.0
      %158 = vst [vmem:[#allocation3 + $0x68] sm:$0xff] 0.0
      %159 = vst [vmem:[#allocation3 + $0x70] sm:$0xff] 0.0
      %160 = vst [vmem:[#allocation3 + $0x78] sm:$0xff] 0.0
      %161 = vst [vmem:[#allocation3 + $0x80] sm:$0xff] 0.0
      %162 = vst [vmem:[#allocation3 + $0x88] sm:$0xff] 0.0
      %163 = vst [vmem:[#allocation3 + $0x90] sm:$0xff] 0.0
      %164 = vst [vmem:[#allocation3 + $0x98] sm:$0xff] 0.0
      %165 = vst [vmem:[#allocation3 + $0xa0] sm:$0xff] 0.0
      %166 = vst [vmem:[#allocation3 + $0xa8] sm:$0xff] 0.0
      %167 = vst [vmem:[#allocation3 + $0xb0] sm:$0xff] 0.0
      %168 = vst [vmem:[#allocation3 + $0xb8] sm:$0xff] 0.0
      %169 = vst [vmem:[#allocation3 + $0xc0] sm:$0xff] 0.0
      %170 = vst [vmem:[#allocation3 + $0xc8] sm:$0xff] 0.0
      %171 = vst [vmem:[#allocation3 + $0xd0] sm:$0xff] 0.0
      %172 = vst [vmem:[#allocation3 + $0xd8] sm:$0xff] 0.0
      %173 = vst [vmem:[#allocation3 + $0xe0] sm:$0xff] 0.0
      %174 = vst [vmem:[#allocation3 + $0xe8] sm:$0xff] 0.0
      %175 = vst [vmem:[#allocation3 + $0xf0] sm:$0xff] 0.0
      %176 = vst [vmem:[#allocation3 + $0xf8] sm:$0xff] 0.0
      %177 = vst [vmem:[#allocation4] sm:$0xff] 0.0
      %178 = vst [vmem:[#allocation4 + $0x8] sm:$0xff] 0.0
      %179 = vst [vmem:[#allocation4 + $0x10] sm:$0xff] 0.0
      %180 = vst [vmem:[#allocation4 + $0x18] sm:$0xff] 0.0
      %181 = vst [vmem:[#allocation4 + $0x20] sm:$0xff] 0.0
      %182 = vst [vmem:[#allocation4 + $0x28] sm:$0xff] 0.0
      %183 = vst [vmem:[#allocation4 + $0x30] sm:$0xff] 0.0
      %184 = vst [vmem:[#allocation4 + $0x38] sm:$0xff] 0.0
      %185 = vst [vmem:[#allocation4 + $0x40] sm:$0xff] 0.0
      %186 = vst [vmem:[#allocation4 + $0x48] sm:$0xff] 0.0
      %187 = vst [vmem:[#allocation4 + $0x50] sm:$0xff] 0.0
      %188 = vst [vmem:[#allocation4 + $0x58] sm:$0xff] 0.0
      %189 = vst [vmem:[#allocation4 + $0x60] sm:$0xff] 0.0
      %190 = vst [vmem:[#allocation4 + $0x68] sm:$0xff] 0.0
      %191 = vst [vmem:[#allocation4 + $0x70] sm:$0xff] 0.0
      %192 = vst [vmem:[#allocation4 + $0x78] sm:$0xff] 0.0
      %193 = vst [vmem:[#allocation4 + $0x80] sm:$0xff] 0.0
      %194 = vst [vmem:[#allocation4 + $0x88] sm:$0xff] 0.0
      %195 = vst [vmem:[#allocation4 + $0x90] sm:$0xff] 0.0
      %196 = vst [vmem:[#allocation4 + $0x98] sm:$0xff] 0.0
      %197 = vst [vmem:[#allocation4 + $0xa0] sm:$0xff] 0.0
      %198 = vst [vmem:[#allocation4 + $0xa8] sm:$0xff] 0.0
      %199 = vst [vmem:[#allocation4 + $0xb0] sm:$0xff] 0.0
      %200 = vst [vmem:[#allocation4 + $0xb8] sm:$0xff] 0.0
      %201 = vst [vmem:[#allocation4 + $0xc0] sm:$0xff] 0.0
      %202 = vst [vmem:[#allocation4 + $0xc8] sm:$0xff] 0.0
      %203 = vst [vmem:[#allocation4 + $0xd0] sm:$0xff] 0.0
      %204 = vst [vmem:[#allocation4 + $0xd8] sm:$0xff] 0.0
      %205 = vst [vmem:[#allocation4 + $0xe0] sm:$0xff] 0.0
      %206 = vst [vmem:[#allocation4 + $0xe8] sm:$0xff] 0.0
      %207 = vst [vmem:[#allocation4 + $0xf0] sm:$0xff] 0.0
      %208 = vst [vmem:[#allocation4 + $0xf8] sm:$0xff] 0.0
    $region37: #{tpu_custom_call.1} parent=1 // pred_fallthru
      _
    %v209 = vld [vmem:[#allocation5] sm:$0xff]
    %v210 = vld [vmem:[#allocation5 + $0x8] sm:$0xff]
    %v211 = vld [vmem:[#allocation5 + $0x10] sm:$0xff]
    %v212 = vld [vmem:[#allocation5 + $0x18] sm:$0xff]
    %v213 = vld [vmem:[#allocation5 + $0x20] sm:$0xff]
    %v214 = vld [vmem:[#allocation5 + $0x28] sm:$0xff]
    %v215 = vld [vmem:[#allocation5 + $0x30] sm:$0xff]
    %v216 = vld [vmem:[#allocation5 + $0x38] sm:$0xff]
    %v217 = vld [vmem:[#allocation5 + $0x40] sm:$0xff]
    %v218 = vld [vmem:[#allocation5 + $0x48] sm:$0xff]
    %v219 = vld [vmem:[#allocation5 + $0x50] sm:$0xff]
    %v220 = vld [vmem:[#allocation5 + $0x58] sm:$0xff]
    %v221 = vld [vmem:[#allocation5 + $0x60] sm:$0xff]
    %v222 = vld [vmem:[#allocation5 + $0x68] sm:$0xff]
    %v223 = vld [vmem:[#allocation5 + $0x70] sm:$0xff]
    %v224 = vld [vmem:[#allocation5 + $0x78] sm:$0xff]
    %v225 = vld [vmem:[#allocation5 + $0x80] sm:$0xff]
    %v226 = vld [vmem:[#allocation5 + $0x88] sm:$0xff]
    %v227 = vld [vmem:[#allocation5 + $0x90] sm:$0xff]
    %v228 = vld [vmem:[#allocation5 + $0x98] sm:$0xff]
    %v229 = vld [vmem:[#allocation5 + $0xa0] sm:$0xff]
    %v230 = vld [vmem:[#allocation5 + $0xa8] sm:$0xff]
    %v231 = vld [vmem:[#allocation5 + $0xb0] sm:$0xff]
    %v232 = vld [vmem:[#allocation5 + $0xb8] sm:$0xff]
    %v233 = vld [vmem:[#allocation5 + $0xc0] sm:$0xff]
    %v234 = vld [vmem:[#allocation5 + $0xc8] sm:$0xff]
    %v235 = vld [vmem:[#allocation5 + $0xd0] sm:$0xff]
    %v236 = vld [vmem:[#allocation5 + $0xd8] sm:$0xff]
    %v237 = vld [vmem:[#allocation5 + $0xe0] sm:$0xff]
    %v238 = vld [vmem:[#allocation5 + $0xe8] sm:$0xff]
    %v239 = vld [vmem:[#allocation5 + $0xf0] sm:$0xff]
    %v240 = vld [vmem:[#allocation5 + $0xf8] sm:$0xff]
    %v241 = vld [vmem:[#allocation5 + $0x100] sm:$0xff]
    %v242 = vld [vmem:[#allocation5 + $0x108] sm:$0xff]
    %v243 = vld [vmem:[#allocation5 + $0x110] sm:$0xff]
    %v244 = vld [vmem:[#allocation5 + $0x118] sm:$0xff]
    %v245 = vld [vmem:[#allocation5 + $0x120] sm:$0xff]
    %v246 = vld [vmem:[#allocation5 + $0x128] sm:$0xff]
    %v247 = vld [vmem:[#allocation5 + $0x130] sm:$0xff]
    %v248 = vld [vmem:[#allocation5 + $0x138] sm:$0xff]
    %v249 = vld [vmem:[#allocation5 + $0x140] sm:$0xff]
    %v250 = vld [vmem:[#allocation5 + $0x148] sm:$0xff]
    %v251 = vld [vmem:[#allocation5 + $0x150] sm:$0xff]
    %v252 = vld [vmem:[#allocation5 + $0x158] sm:$0xff]
    %v253 = vld [vmem:[#allocation5 + $0x160] sm:$0xff]
    %v254 = vld [vmem:[#allocation5 + $0x168] sm:$0xff]
    %v255 = vld [vmem:[#allocation5 + $0x170] sm:$0xff]
    %v256 = vld [vmem:[#allocation5 + $0x178] sm:$0xff]
    %v257 = vld [vmem:[#allocation5 + $0x180] sm:$0xff]
    %v258 = vld [vmem:[#allocation5 + $0x188] sm:$0xff]
    %v259 = vld [vmem:[#allocation5 + $0x190] sm:$0xff]
    %v260 = vld [vmem:[#allocation5 + $0x198] sm:$0xff]
    %v261 = vld [vmem:[#allocation5 + $0x1a0] sm:$0xff]
    %v262 = vld [vmem:[#allocation5 + $0x1a8] sm:$0xff]
    %v263 = vld [vmem:[#allocation5 + $0x1b0] sm:$0xff]
    %v264 = vld [vmem:[#allocation5 + $0x1b8] sm:$0xff]
    %v265 = vld [vmem:[#allocation5 + $0x1c0] sm:$0xff]
    %v266 = vld [vmem:[#allocation5 + $0x1c8] sm:$0xff]
    %v267 = vld [vmem:[#allocation5 + $0x1d0] sm:$0xff]
    %v268 = vld [vmem:[#allocation5 + $0x1d8] sm:$0xff]
    %v269 = vld [vmem:[#allocation5 + $0x1e0] sm:$0xff]
    %v270 = vld [vmem:[#allocation5 + $0x1e8] sm:$0xff]
    %v271 = vld [vmem:[#allocation5 + $0x1f0] sm:$0xff]
    %v272 = vld [vmem:[#allocation5 + $0x1f8] sm:$0xff]
    %v273 = vld [vmem:[#allocation2] sm:$0xff]
    %v274 = vld [vmem:[#allocation2 + $0x8] sm:$0xff]
    %v275 = vld [vmem:[#allocation2 + $0x10] sm:$0xff]
    %v276 = vld [vmem:[#allocation2 + $0x18] sm:$0xff]
    %v277 = vld [vmem:[#allocation2 + $0x20] sm:$0xff]
    %v278 = vld [vmem:[#allocation2 + $0x28] sm:$0xff]
    %v279 = vld [vmem:[#allocation2 + $0x30] sm:$0xff]
    %v280 = vld [vmem:[#allocation2 + $0x38] sm:$0xff]
    %v281 = vld [vmem:[#allocation2 + $0x40] sm:$0xff]
    %v282 = vld [vmem:[#allocation2 + $0x48] sm:$0xff]
    %v283 = vld [vmem:[#allocation2 + $0x50] sm:$0xff]
    %v284 = vld [vmem:[#allocation2 + $0x58] sm:$0xff]
    %v285 = vld [vmem:[#allocation2 + $0x60] sm:$0xff]
    %v286 = vld [vmem:[#allocation2 + $0x68] sm:$0xff]
    %v287 = vld [vmem:[#allocation2 + $0x70] sm:$0xff]
    %v288 = vld [vmem:[#allocation2 + $0x78] sm:$0xff]
    %v289 = vld [vmem:[#allocation2 + $0x80] sm:$0xff]
    %v290 = vld [vmem:[#allocation2 + $0x88] sm:$0xff]
    %v291 = vld [vmem:[#allocation2 + $0x90] sm:$0xff]
    %v292 = vld [vmem:[#allocation2 + $0x98] sm:$0xff]
    %v293 = vld [vmem:[#allocation2 + $0xa0] sm:$0xff]
    %v294 = vld [vmem:[#allocation2 + $0xa8] sm:$0xff]
    %v295 = vld [vmem:[#allocation2 + $0xb0] sm:$0xff]
    %v296 = vld [vmem:[#allocation2 + $0xb8] sm:$0xff]
    %v297 = vld [vmem:[#allocation2 + $0xc0] sm:$0xff]
    %v298 = vld [vmem:[#allocation2 + $0xc8] sm:$0xff]
    %v299 = vld [vmem:[#allocation2 + $0xd0] sm:$0xff]
    %v300 = vld [vmem:[#allocation2 + $0xd8] sm:$0xff]
    %v301 = vld [vmem:[#allocation2 + $0xe0] sm:$0xff]
    %v302 = vld [vmem:[#allocation2 + $0xe8] sm:$0xff]
    %v303 = vld [vmem:[#allocation2 + $0xf0] sm:$0xff]
    %v304 = vld [vmem:[#allocation2 + $0xf8] sm:$0xff]
    %v305 = vld [vmem:[#allocation2 + $0x100] sm:$0xff]
    %v306 = vld [vmem:[#allocation2 + $0x108] sm:$0xff]
    %v307 = vld [vmem:[#allocation2 + $0x110] sm:$0xff]
    %v308 = vld [vmem:[#allocation2 + $0x118] sm:$0xff]
    %v309 = vld [vmem:[#allocation2 + $0x120] sm:$0xff]
    %v310 = vld [vmem:[#allocation2 + $0x128] sm:$0xff]
    %v311 = vld [vmem:[#allocation2 + $0x130] sm:$0xff]
    %v312 = vld [vmem:[#allocation2 + $0x138] sm:$0xff]
    %v313 = vld [vmem:[#allocation2 + $0x140] sm:$0xff]
    %v314 = vld [vmem:[#allocation2 + $0x148] sm:$0xff]
    %v315 = vld [vmem:[#allocation2 + $0x150] sm:$0xff]
    %v316 = vld [vmem:[#allocation2 + $0x158] sm:$0xff]
    %v317 = vld [vmem:[#allocation2 + $0x160] sm:$0xff]
    %v318 = vld [vmem:[#allocation2 + $0x168] sm:$0xff]
    %v319 = vld [vmem:[#allocation2 + $0x170] sm:$0xff]
    %v320 = vld [vmem:[#allocation2 + $0x178] sm:$0xff]
    %v321 = vld [vmem:[#allocation2 + $0x180] sm:$0xff]
    %v322 = vld [vmem:[#allocation2 + $0x188] sm:$0xff]
    %v323 = vld [vmem:[#allocation2 + $0x190] sm:$0xff]
    %v324 = vld [vmem:[#allocation2 + $0x198] sm:$0xff]
    %v325 = vld [vmem:[#allocation2 + $0x1a0] sm:$0xff]
    %v326 = vld [vmem:[#allocation2 + $0x1a8] sm:$0xff]
    %v327 = vld [vmem:[#allocation2 + $0x1b0] sm:$0xff]
    %v328 = vld [vmem:[#allocation2 + $0x1b8] sm:$0xff]
    %v329 = vld [vmem:[#allocation2 + $0x1c0] sm:$0xff]
    %v330 = vld [vmem:[#allocation2 + $0x1c8] sm:$0xff]
    %v331 = vld [vmem:[#allocation2 + $0x1d0] sm:$0xff]
    %v332 = vld [vmem:[#allocation2 + $0x1d8] sm:$0xff]
    %v333 = vld [vmem:[#allocation2 + $0x1e0] sm:$0xff]
    %v334 = vld [vmem:[#allocation2 + $0x1e8] sm:$0xff]
    %v335 = vld [vmem:[#allocation2 + $0x1f0] sm:$0xff]
    %v336 = vld [vmem:[#allocation2 + $0x1f8] sm:$0xff]
    %v337 = vld [vmem:[#allocation8] sm:$0xff]
    %v338 = vld [vmem:[#allocation8 + $0x8] sm:$0xff]
    %v339 = vld [vmem:[#allocation8 + $0x10] sm:$0xff]
    %v340 = vld [vmem:[#allocation8 + $0x18] sm:$0xff]
    %v341 = vld [vmem:[#allocation8 + $0x20] sm:$0xff]
    %v342 = vld [vmem:[#allocation8 + $0x28] sm:$0xff]
    %v343 = vld [vmem:[#allocation8 + $0x30] sm:$0xff]
    %v344 = vld [vmem:[#allocation8 + $0x38] sm:$0xff]
    %v345 = vld [vmem:[#allocation8 + $0x40] sm:$0xff]
    %v346 = vld [vmem:[#allocation8 + $0x48] sm:$0xff]
    %v347 = vld [vmem:[#allocation8 + $0x50] sm:$0xff]
    %v348 = vld [vmem:[#allocation8 + $0x58] sm:$0xff]
    %v349 = vld [vmem:[#allocation8 + $0x60] sm:$0xff]
    %v350 = vld [vmem:[#allocation8 + $0x68] sm:$0xff]
    %v351 = vld [vmem:[#allocation8 + $0x70] sm:$0xff]
    %v352 = vld [vmem:[#allocation8 + $0x78] sm:$0xff]
    %v353 = vld [vmem:[#allocation8 + $0x80] sm:$0xff]
    %v354 = vld [vmem:[#allocation8 + $0x88] sm:$0xff]
    %v355 = vld [vmem:[#allocation8 + $0x90] sm:$0xff]
    %v356 = vld [vmem:[#allocation8 + $0x98] sm:$0xff]
    %v357 = vld [vmem:[#allocation8 + $0xa0] sm:$0xff]
    %v358 = vld [vmem:[#allocation8 + $0xa8] sm:$0xff]
    %v359 = vld [vmem:[#allocation8 + $0xb0] sm:$0xff]
    %v360 = vld [vmem:[#allocation8 + $0xb8] sm:$0xff]
    %v361 = vld [vmem:[#allocation8 + $0xc0] sm:$0xff]
    %v362 = vld [vmem:[#allocation8 + $0xc8] sm:$0xff]
    %v363 = vld [vmem:[#allocation8 + $0xd0] sm:$0xff]
    %v364 = vld [vmem:[#allocation8 + $0xd8] sm:$0xff]
    %v365 = vld [vmem:[#allocation8 + $0xe0] sm:$0xff]
    %v366 = vld [vmem:[#allocation8 + $0xe8] sm:$0xff]
    %v367 = vld [vmem:[#allocation8 + $0xf0] sm:$0xff]
    %v368 = vld [vmem:[#allocation8 + $0xf8] sm:$0xff]
    %v369 = vld [vmem:[#allocation8 + $0x100] sm:$0xff]
    %v370 = vld [vmem:[#allocation8 + $0x108] sm:$0xff]
    %v371 = vld [vmem:[#allocation8 + $0x110] sm:$0xff]
    %v372 = vld [vmem:[#allocation8 + $0x118] sm:$0xff]
    %v373 = vld [vmem:[#allocation8 + $0x120] sm:$0xff]
    %v374 = vld [vmem:[#allocation8 + $0x128] sm:$0xff]
    %v375 = vld [vmem:[#allocation8 + $0x130] sm:$0xff]
    %v376 = vld [vmem:[#allocation8 + $0x138] sm:$0xff]
    %v377 = vld [vmem:[#allocation8 + $0x140] sm:$0xff]
    %v378 = vld [vmem:[#allocation8 + $0x148] sm:$0xff]
    %v379 = vld [vmem:[#allocation8 + $0x150] sm:$0xff]
    %v380 = vld [vmem:[#allocation8 + $0x158] sm:$0xff]
    %v381 = vld [vmem:[#allocation8 + $0x160] sm:$0xff]
    %v382 = vld [vmem:[#allocation8 + $0x168] sm:$0xff]
    %v383 = vld [vmem:[#allocation8 + $0x170] sm:$0xff]
    %v384 = vld [vmem:[#allocation8 + $0x178] sm:$0xff]
    %v385 = vld [vmem:[#allocation8 + $0x180] sm:$0xff]
    %v386 = vld [vmem:[#allocation8 + $0x188] sm:$0xff]
    %v387 = vld [vmem:[#allocation8 + $0x190] sm:$0xff]
    %v388 = vld [vmem:[#allocation8 + $0x198] sm:$0xff]
    %v389 = vld [vmem:[#allocation8 + $0x1a0] sm:$0xff]
    %v390 = vld [vmem:[#allocation8 + $0x1a8] sm:$0xff]
    %v391 = vld [vmem:[#allocation8 + $0x1b0] sm:$0xff]
    %v392 = vld [vmem:[#allocation8 + $0x1b8] sm:$0xff]
    %v393 = vld [vmem:[#allocation8 + $0x1c0] sm:$0xff]
    %v394 = vld [vmem:[#allocation8 + $0x1c8] sm:$0xff]
    %v395 = vld [vmem:[#allocation8 + $0x1d0] sm:$0xff]
    %v396 = vld [vmem:[#allocation8 + $0x1d8] sm:$0xff]
    %v397 = vld [vmem:[#allocation8 + $0x1e0] sm:$0xff]
    %v398 = vld [vmem:[#allocation8 + $0x1e8] sm:$0xff]
    %v399 = vld [vmem:[#allocation8 + $0x1f0] sm:$0xff]
    %v400 = vld [vmem:[#allocation8 + $0x1f8] sm:$0xff]
    %401 = vmatprep.subr.mxu0 %v368
    %402 = vmatpush1.xpose.msra.mxu0 %v367
    %403 = vmatprep.subr.mxu0 %v366
    %404 = vmatpush1.xpose.msra.mxu0 %v365
    %405 = vmatprep.subr.mxu0 %v364
    %406 = vmatpush1.xpose.msra.mxu0 %v363
    %407 = vmatprep.subr.mxu0 %v362
    %408 = vmatpush1.xpose.msra.mxu0 %v361
    %409 = vmatprep.subr.mxu0 %v360
    %410 = vmatpush1.xpose.msra.mxu0 %v359
    %411 = vmatprep.subr.mxu0 %v358
    %412 = vmatpush1.xpose.msra.mxu0 %v357
    %413 = vmatprep.subr.mxu0 %v356
    %414 = vmatpush1.xpose.msra.mxu0 %v355
    %415 = vmatprep.subr.mxu0 %v354
    %416 = vmatpush1.xpose.msra.mxu0 %v353
    %417 = vmatprep.subr.mxu0 %v352
    %418 = vmatpush1.xpose.msra.mxu0 %v351
    %419 = vmatprep.subr.mxu0 %v350
    %420 = vmatpush1.xpose.msra.mxu0 %v349
    %421 = vmatprep.subr.mxu0 %v348
    %422 = vmatpush1.xpose.msra.mxu0 %v347
    %423 = vmatprep.subr.mxu0 %v346
    %424 = vmatpush1.xpose.msra.mxu0 %v345
    %425 = vmatprep.subr.mxu0 %v344
    %426 = vmatpush1.xpose.msra.mxu0 %v343
    %427 = vmatprep.subr.mxu0 %v342
    %428 = vmatpush1.xpose.msra.mxu0 %v341
    %429 = vmatprep.subr.mxu0 %v340
    %430 = vmatpush1.xpose.msra.mxu0 %v339
    %431 = vmatprep.subr.mxu0 %v338
    %432 = vmatpush1.xpose.msra.mxu0 %v337
    %433 = vmatprep.subr.mxu0 %v400
    %434 = vmatpush2.xpose.msra.mxu0 %v399
    %435 = vmatprep.subr.mxu0 %v398
    %436 = vmatpush2.xpose.msra.mxu0 %v397
    %437 = vmatprep.subr.mxu0 %v396
    %438 = vmatpush2.xpose.msra.mxu0 %v395
    %439 = vmatprep.subr.mxu0 %v394
    %440 = vmatpush2.xpose.msra.mxu0 %v393
    %441 = vmatprep.subr.mxu0 %v392
    %442 = vmatpush2.xpose.msra.mxu0 %v391
    %443 = vmatprep.subr.mxu0 %v390
    %444 = vmatpush2.xpose.msra.mxu0 %v389
    %445 = vmatprep.subr.mxu0 %v388
    %446 = vmatpush2.xpose.msra.mxu0 %v387
    %447 = vmatprep.subr.mxu0 %v386
    %448 = vmatpush2.xpose.msra.mxu0 %v385
    %449 = vmatprep.subr.mxu0 %v384
    %450 = vmatpush2.xpose.msra.mxu0 %v383
    %451 = vmatprep.subr.mxu0 %v382
    %452 = vmatpush2.xpose.msra.mxu0 %v381
    %453 = vmatprep.subr.mxu0 %v380
    %454 = vmatpush2.xpose.msra.mxu0 %v379
    %455 = vmatprep.subr.mxu0 %v378
    %456 = vmatpush2.xpose.msra.mxu0 %v377
    %457 = vmatprep.subr.mxu0 %v376
    %458 = vmatpush2.xpose.msra.mxu0 %v375
    %459 = vmatprep.subr.mxu0 %v374
    %460 = vmatpush2.xpose.msra.mxu0 %v373
    %461 = vmatprep.subr.mxu0 %v372
    %462 = vmatpush2.xpose.msra.mxu0 %v371
    %463 = vmatprep.subr.mxu0 %v370
    %464 = vmatpush2.xpose.msra.mxu0 %v369
    %465 = vmatprep.mubr.f32.mxu0 %v210
    %466 = vmatmul.mubr.f32.gmra.mxu0 %v209
    %v467 = vpop.f32.mrf.mxu0
    %v468 = vadd.f32 0.0, %v467
    %v469 = vpop.f32.mrf.mxu0
    %v470 = vadd.f32 0.0, %v469
    %471 = vmatprep.mubr.f32.mxu0 %v212
    %472 = vmatmul.mubr.f32.gmra.mxu0 %v211
    %v473 = vpop.f32.mrf.mxu0
    %v474 = vadd.f32 0.0, %v473
    %v475 = vpop.f32.mrf.mxu0
    %v476 = vadd.f32 0.0, %v475
    %477 = vmatprep.mubr.f32.mxu0 %v214
    %478 = vmatmul.mubr.f32.gmra.mxu0 %v213
    %v479 = vpop.f32.mrf.mxu0
    %v480 = vadd.f32 0.0, %v479
    %v481 = vpop.f32.mrf.mxu0
    %v482 = vadd.f32 0.0, %v481
    %483 = vmatprep.mubr.f32.mxu0 %v216
    %484 = vmatmul.mubr.f32.gmra.mxu0 %v215
    %v485 = vpop.f32.mrf.mxu0
    %v486 = vadd.f32 0.0, %v485
    %v487 = vpop.f32.mrf.mxu0
    %v488 = vadd.f32 0.0, %v487
    %489 = vmatprep.mubr.f32.mxu0 %v218
    %490 = vmatmul.mubr.f32.gmra.mxu0 %v217
    %v491 = vpop.f32.mrf.mxu0
    %v492 = vadd.f32 0.0, %v491
    %v493 = vpop.f32.mrf.mxu0
    %v494 = vadd.f32 0.0, %v493
    %495 = vmatprep.mubr.f32.mxu0 %v220
    %496 = vmatmul.mubr.f32.gmra.mxu0 %v219
    %v497 = vpop.f32.mrf.mxu0
    %v498 = vadd.f32 0.0, %v497
    %v499 = vpop.f32.mrf.mxu0
    %v500 = vadd.f32 0.0, %v499
    %501 = vmatprep.mubr.f32.mxu0 %v222
    %502 = vmatmul.mubr.f32.gmra.mxu0 %v221
    %v503 = vpop.f32.mrf.mxu0
    %v504 = vadd.f32 0.0, %v503
    %v505 = vpop.f32.mrf.mxu0
    %v506 = vadd.f32 0.0, %v505
    %507 = vmatprep.mubr.f32.mxu0 %v224
    %508 = vmatmul.mubr.f32.gmra.mxu0 %v223
    %v509 = vpop.f32.mrf.mxu0
    %v510 = vadd.f32 0.0, %v509
    %v511 = vpop.f32.mrf.mxu0
    %v512 = vadd.f32 0.0, %v511
    %513 = vmatprep.mubr.f32.mxu0 %v226
    %514 = vmatmul.mubr.f32.gmra.mxu0 %v225
    %v515 = vpop.f32.mrf.mxu0
    %v516 = vadd.f32 0.0, %v515
    %v517 = vpop.f32.mrf.mxu0
    %v518 = vadd.f32 0.0, %v517
    %519 = vmatprep.mubr.f32.mxu0 %v228
    %520 = vmatmul.mubr.f32.gmra.mxu0 %v227
    %v521 = vpop.f32.mrf.mxu0
    %v522 = vadd.f32 0.0, %v521
    %v523 = vpop.f32.mrf.mxu0
    %v524 = vadd.f32 0.0, %v523
    %525 = vmatprep.mubr.f32.mxu0 %v230
    %526 = vmatmul.mubr.f32.gmra.mxu0 %v229
    %v527 = vpop.f32.mrf.mxu0
    %v528 = vadd.f32 0.0, %v527
    %v529 = vpop.f32.mrf.mxu0
    %v530 = vadd.f32 0.0, %v529
    %531 = vmatprep.mubr.f32.mxu0 %v232
    %532 = vmatmul.mubr.f32.gmra.mxu0 %v231
    %v533 = vpop.f32.mrf.mxu0
    %v534 = vadd.f32 0.0, %v533
    %v535 = vpop.f32.mrf.mxu0
    %v536 = vadd.f32 0.0, %v535
    %537 = vmatprep.mubr.f32.mxu0 %v234
    %538 = vmatmul.mubr.f32.gmra.mxu0 %v233
    %v539 = vpop.f32.mrf.mxu0
    %v540 = vadd.f32 0.0, %v539
    %v541 = vpop.f32.mrf.mxu0
    %v542 = vadd.f32 0.0, %v541
    %543 = vmatprep.mubr.f32.mxu0 %v236
    %544 = vmatmul.mubr.f32.gmra.mxu0 %v235
    %v545 = vpop.f32.mrf.mxu0
    %v546 = vadd.f32 0.0, %v545
    %v547 = vpop.f32.mrf.mxu0
    %v548 = vadd.f32 0.0, %v547
    %549 = vmatprep.mubr.f32.mxu0 %v238
    %550 = vmatmul.mubr.f32.gmra.mxu0 %v237
    %v551 = vpop.f32.mrf.mxu0
    %v552 = vadd.f32 0.0, %v551
    %v553 = vpop.f32.mrf.mxu0
    %v554 = vadd.f32 0.0, %v553
    %555 = vmatprep.mubr.f32.mxu0 %v240
    %556 = vmatmul.mubr.f32.gmra.mxu0 %v239
    %v557 = vpop.f32.mrf.mxu0
    %v558 = vadd.f32 0.0, %v557
    %v559 = vpop.f32.mrf.mxu0
    %v560 = vadd.f32 0.0, %v559
    %561 = vmatprep.mubr.f32.mxu0 %v242
    %562 = vmatmul.mubr.f32.gmra.mxu0 %v241
    %v563 = vpop.f32.mrf.mxu0
    %v564 = vadd.f32 0.0, %v563
    %v565 = vpop.f32.mrf.mxu0
    %v566 = vadd.f32 0.0, %v565
    %567 = vmatprep.mubr.f32.mxu0 %v244
    %568 = vmatmul.mubr.f32.gmra.mxu0 %v243
    %v569 = vpop.f32.mrf.mxu0
    %v570 = vadd.f32 0.0, %v569
    %v571 = vpop.f32.mrf.mxu0
    %v572 = vadd.f32 0.0, %v571
    %573 = vmatprep.mubr.f32.mxu0 %v246
    %574 = vmatmul.mubr.f32.gmra.mxu0 %v245
    %v575 = vpop.f32.mrf.mxu0
    %v576 = vadd.f32 0.0, %v575
    %v577 = vpop.f32.mrf.mxu0
    %v578 = vadd.f32 0.0, %v577
    %579 = vmatprep.mubr.f32.mxu0 %v248
    %580 = vmatmul.mubr.f32.gmra.mxu0 %v247
    %v581 = vpop.f32.mrf.mxu0
    %v582 = vadd.f32 0.0, %v581
    %v583 = vpop.f32.mrf.mxu0
    %v584 = vadd.f32 0.0, %v583
    %585 = vmatprep.mubr.f32.mxu0 %v250
    %586 = vmatmul.mubr.f32.gmra.mxu0 %v249
    %v587 = vpop.f32.mrf.mxu0
    %v588 = vadd.f32 0.0, %v587
    %v589 = vpop.f32.mrf.mxu0
    %v590 = vadd.f32 0.0, %v589
    %591 = vmatprep.mubr.f32.mxu0 %v252
    %592 = vmatmul.mubr.f32.gmra.mxu0 %v251
    %v593 = vpop.f32.mrf.mxu0
    %v594 = vadd.f32 0.0, %v593
    %v595 = vpop.f32.mrf.mxu0
    %v596 = vadd.f32 0.0, %v595
    %597 = vmatprep.mubr.f32.mxu0 %v254
    %598 = vmatmul.mubr.f32.gmra.mxu0 %v253
    %v599 = vpop.f32.mrf.mxu0
    %v600 = vadd.f32 0.0, %v599
    %v601 = vpop.f32.mrf.mxu0
    %v602 = vadd.f32 0.0, %v601
    %603 = vmatprep.mubr.f32.mxu0 %v256
    %604 = vmatmul.mubr.f32.gmra.mxu0 %v255
    %v605 = vpop.f32.mrf.mxu0
    %v606 = vadd.f32 0.0, %v605
    %v607 = vpop.f32.mrf.mxu0
    %v608 = vadd.f32 0.0, %v607
    %609 = vmatprep.mubr.f32.mxu0 %v258
    %610 = vmatmul.mubr.f32.gmra.mxu0 %v257
    %v611 = vpop.f32.mrf.mxu0
    %v612 = vadd.f32 0.0, %v611
    %v613 = vpop.f32.mrf.mxu0
    %v614 = vadd.f32 0.0, %v613
    %615 = vmatprep.mubr.f32.mxu0 %v260
    %616 = vmatmul.mubr.f32.gmra.mxu0 %v259
    %v617 = vpop.f32.mrf.mxu0
    %v618 = vadd.f32 0.0, %v617
    %v619 = vpop.f32.mrf.mxu0
    %v620 = vadd.f32 0.0, %v619
    %621 = vmatprep.mubr.f32.mxu0 %v262
    %622 = vmatmul.mubr.f32.gmra.mxu0 %v261
    %v623 = vpop.f32.mrf.mxu0
    %v624 = vadd.f32 0.0, %v623
    %v625 = vpop.f32.mrf.mxu0
    %v626 = vadd.f32 0.0, %v625
    %627 = vmatprep.mubr.f32.mxu0 %v264
    %628 = vmatmul.mubr.f32.gmra.mxu0 %v263
    %v629 = vpop.f32.mrf.mxu0
    %v630 = vadd.f32 0.0, %v629
    %v631 = vpop.f32.mrf.mxu0
    %v632 = vadd.f32 0.0, %v631
    %633 = vmatprep.mubr.f32.mxu0 %v266
    %634 = vmatmul.mubr.f32.gmra.mxu0 %v265
    %v635 = vpop.f32.mrf.mxu0
    %v636 = vadd.f32 0.0, %v635
    %v637 = vpop.f32.mrf.mxu0
    %v638 = vadd.f32 0.0, %v637
    %639 = vmatprep.mubr.f32.mxu0 %v268
    %640 = vmatmul.mubr.f32.gmra.mxu0 %v267
    %v641 = vpop.f32.mrf.mxu0
    %v642 = vadd.f32 0.0, %v641
    %v643 = vpop.f32.mrf.mxu0
    %v644 = vadd.f32 0.0, %v643
    %645 = vmatprep.mubr.f32.mxu0 %v270
    %646 = vmatmul.mubr.f32.gmra.mxu0 %v269
    %v647 = vpop.f32.mrf.mxu0
    %v648 = vadd.f32 0.0, %v647
    %v649 = vpop.f32.mrf.mxu0
    %v650 = vadd.f32 0.0, %v649
    %651 = vmatprep.mubr.f32.mxu0 %v272
    %652 = vmatmul.mubr.f32.gmra.mxu0 %v271
    %v653 = vpop.f32.mrf.mxu0
    %v654 = vadd.f32 0.0, %v653
    %v655 = vpop.f32.mrf.mxu0
    %v656 = vadd.f32 0.0, %v655
    %657 = vdwg.mxu0
    %v658 = vadd.f32 %v273, %v468
    %v659 = vadd.f32 %v274, %v470
    %v660 = vadd.f32 %v275, %v474
    %v661 = vadd.f32 %v276, %v476
    %v662 = vadd.f32 %v277, %v480
    %v663 = vadd.f32 %v278, %v482
    %v664 = vadd.f32 %v279, %v486
    %v665 = vadd.f32 %v280, %v488
    %v666 = vadd.f32 %v281, %v492
    %v667 = vadd.f32 %v282, %v494
    %v668 = vadd.f32 %v283, %v498
    %v669 = vadd.f32 %v284, %v500
    %v670 = vadd.f32 %v285, %v504
    %v671 = vadd.f32 %v286, %v506
    %v672 = vadd.f32 %v287, %v510
    %v673 = vadd.f32 %v288, %v512
    %v674 = vadd.f32 %v289, %v516
    %v675 = vadd.f32 %v290, %v518
    %v676 = vadd.f32 %v291, %v522
    %v677 = vadd.f32 %v292, %v524
    %v678 = vadd.f32 %v293, %v528
    %v679 = vadd.f32 %v294, %v530
    %v680 = vadd.f32 %v295, %v534
    %v681 = vadd.f32 %v296, %v536
    %v682 = vadd.f32 %v297, %v540
    %v683 = vadd.f32 %v298, %v542
    %v684 = vadd.f32 %v299, %v546
    %v685 = vadd.f32 %v300, %v548
    %v686 = vadd.f32 %v301, %v552
    %v687 = vadd.f32 %v302, %v554
    %v688 = vadd.f32 %v303, %v558
    %v689 = vadd.f32 %v304, %v560
    %v690 = vadd.f32 %v305, %v564
    %v691 = vadd.f32 %v306, %v566
    %v692 = vadd.f32 %v307, %v570
    %v693 = vadd.f32 %v308, %v572
    %v694 = vadd.f32 %v309, %v576
    %v695 = vadd.f32 %v310, %v578
    %v696 = vadd.f32 %v311, %v582
    %v697 = vadd.f32 %v312, %v584
    %v698 = vadd.f32 %v313, %v588
    %v699 = vadd.f32 %v314, %v590
    %v700 = vadd.f32 %v315, %v594
    %v701 = vadd.f32 %v316, %v596
    %v702 = vadd.f32 %v317, %v600
    %v703 = vadd.f32 %v318, %v602
    %v704 = vadd.f32 %v319, %v606
    %v705 = vadd.f32 %v320, %v608
    %v706 = vadd.f32 %v321, %v612
    %v707 = vadd.f32 %v322, %v614
    %v708 = vadd.f32 %v323, %v618
    %v709 = vadd.f32 %v324, %v620
    %v710 = vadd.f32 %v325, %v624
    %v711 = vadd.f32 %v326, %v626
    %v712 = vadd.f32 %v327, %v630
    %v713 = vadd.f32 %v328, %v632
    %v714 = vadd.f32 %v329, %v636
    %v715 = vadd.f32 %v330, %v638
    %v716 = vadd.f32 %v331, %v642
    %v717 = vadd.f32 %v332, %v644
    %v718 = vadd.f32 %v333, %v648
    %v719 = vadd.f32 %v334, %v650
    %v720 = vadd.f32 %v335, %v654
    %v721 = vadd.f32 %v336, %v656
    %722 = vst [vmem:[#allocation2] sm:$0xff] %v658
    %723 = vst [vmem:[#allocation2 + $0x8] sm:$0xff] %v659
    %724 = vst [vmem:[#allocation2 + $0x10] sm:$0xff] %v660
    %725 = vst [vmem:[#allocation2 + $0x18] sm:$0xff] %v661
    %726 = vst [vmem:[#allocation2 + $0x20] sm:$0xff] %v662
    %727 = vst [vmem:[#allocation2 + $0x28] sm:$0xff] %v663
    %728 = vst [vmem:[#allocation2 + $0x30] sm:$0xff] %v664
    %729 = vst [vmem:[#allocation2 + $0x38] sm:$0xff] %v665
    %730 = vst [vmem:[#allocation2 + $0x40] sm:$0xff] %v666
    %731 = vst [vmem:[#allocation2 + $0x48] sm:$0xff] %v667
    %732 = vst [vmem:[#allocation2 + $0x50] sm:$0xff] %v668
    %733 = vst [vmem:[#allocation2 + $0x58] sm:$0xff] %v669
    %734 = vst [vmem:[#allocation2 + $0x60] sm:$0xff] %v670
    %735 = vst [vmem:[#allocation2 + $0x68] sm:$0xff] %v671
    %736 = vst [vmem:[#allocation2 + $0x70] sm:$0xff] %v672
    %737 = vst [vmem:[#allocation2 + $0x78] sm:$0xff] %v673
    %738 = vst [vmem:[#allocation2 + $0x80] sm:$0xff] %v674
    %739 = vst [vmem:[#allocation2 + $0x88] sm:$0xff] %v675
    %740 = vst [vmem:[#allocation2 + $0x90] sm:$0xff] %v676
    %741 = vst [vmem:[#allocation2 + $0x98] sm:$0xff] %v677
    %742 = vst [vmem:[#allocation2 + $0xa0] sm:$0xff] %v678
    %743 = vst [vmem:[#allocation2 + $0xa8] sm:$0xff] %v679
    %744 = vst [vmem:[#allocation2 + $0xb0] sm:$0xff] %v680
    %745 = vst [vmem:[#allocation2 + $0xb8] sm:$0xff] %v681
    %746 = vst [vmem:[#allocation2 + $0xc0] sm:$0xff] %v682
    %747 = vst [vmem:[#allocation2 + $0xc8] sm:$0xff] %v683
    %748 = vst [vmem:[#allocation2 + $0xd0] sm:$0xff] %v684
    %749 = vst [vmem:[#allocation2 + $0xd8] sm:$0xff] %v685
    %750 = vst [vmem:[#allocation2 + $0xe0] sm:$0xff] %v686
    %751 = vst [vmem:[#allocation2 + $0xe8] sm:$0xff] %v687
    %752 = vst [vmem:[#allocation2 + $0xf0] sm:$0xff] %v688
    %753 = vst [vmem:[#allocation2 + $0xf8] sm:$0xff] %v689
    %754 = vst [vmem:[#allocation2 + $0x100] sm:$0xff] %v690
    %755 = vst [vmem:[#allocation2 + $0x108] sm:$0xff] %v691
    %756 = vst [vmem:[#allocation2 + $0x110] sm:$0xff] %v692
    %757 = vst [vmem:[#allocation2 + $0x118] sm:$0xff] %v693
    %758 = vst [vmem:[#allocation2 + $0x120] sm:$0xff] %v694
    %759 = vst [vmem:[#allocation2 + $0x128] sm:$0xff] %v695
    %760 = vst [vmem:[#allocation2 + $0x130] sm:$0xff] %v696
    %761 = vst [vmem:[#allocation2 + $0x138] sm:$0xff] %v697
    %762 = vst [vmem:[#allocation2 + $0x140] sm:$0xff] %v698
    %763 = vst [vmem:[#allocation2 + $0x148] sm:$0xff] %v699
    %764 = vst [vmem:[#allocation2 + $0x150] sm:$0xff] %v700
    %765 = vst [vmem:[#allocation2 + $0x158] sm:$0xff] %v701
    %766 = vst [vmem:[#allocation2 + $0x160] sm:$0xff] %v702
    %767 = vst [vmem:[#allocation2 + $0x168] sm:$0xff] %v703
    %768 = vst [vmem:[#allocation2 + $0x170] sm:$0xff] %v704
    %769 = vst [vmem:[#allocation2 + $0x178] sm:$0xff] %v705
    %770 = vst [vmem:[#allocation2 + $0x180] sm:$0xff] %v706
    %771 = vst [vmem:[#allocation2 + $0x188] sm:$0xff] %v707
    %772 = vst [vmem:[#allocation2 + $0x190] sm:$0xff] %v708
    %773 = vst [vmem:[#allocation2 + $0x198] sm:$0xff] %v709
    %774 = vst [vmem:[#allocation2 + $0x1a0] sm:$0xff] %v710
    %775 = vst [vmem:[#allocation2 + $0x1a8] sm:$0xff] %v711
    %776 = vst [vmem:[#allocation2 + $0x1b0] sm:$0xff] %v712
    %777 = vst [vmem:[#allocation2 + $0x1b8] sm:$0xff] %v713
    %778 = vst [vmem:[#allocation2 + $0x1c0] sm:$0xff] %v714
    %779 = vst [vmem:[#allocation2 + $0x1c8] sm:$0xff] %v715
    %780 = vst [vmem:[#allocation2 + $0x1d0] sm:$0xff] %v716
    %781 = vst [vmem:[#allocation2 + $0x1d8] sm:$0xff] %v717
    %782 = vst [vmem:[#allocation2 + $0x1e0] sm:$0xff] %v718
    %783 = vst [vmem:[#allocation2 + $0x1e8] sm:$0xff] %v719
    %784 = vst [vmem:[#allocation2 + $0x1f0] sm:$0xff] %v720
    %785 = vst [vmem:[#allocation2 + $0x1f8] sm:$0xff] %v721
    %v786 = vld [vmem:[#allocation3] sm:$0xff]
    %v787 = vld [vmem:[#allocation3 + $0x8] sm:$0xff]
    %v788 = vld [vmem:[#allocation3 + $0x10] sm:$0xff]
    %v789 = vld [vmem:[#allocation3 + $0x18] sm:$0xff]
    %v790 = vld [vmem:[#allocation3 + $0x20] sm:$0xff]
    %v791 = vld [vmem:[#allocation3 + $0x28] sm:$0xff]
    %v792 = vld [vmem:[#allocation3 + $0x30] sm:$0xff]
    %v793 = vld [vmem:[#allocation3 + $0x38] sm:$0xff]
    %v794 = vld [vmem:[#allocation3 + $0x40] sm:$0xff]
    %v795 = vld [vmem:[#allocation3 + $0x48] sm:$0xff]
    %v796 = vld [vmem:[#allocation3 + $0x50] sm:$0xff]
    %v797 = vld [vmem:[#allocation3 + $0x58] sm:$0xff]
    %v798 = vld [vmem:[#allocation3 + $0x60] sm:$0xff]
    %v799 = vld [vmem:[#allocation3 + $0x68] sm:$0xff]
    %v800 = vld [vmem:[#allocation3 + $0x70] sm:$0xff]
    %v801 = vld [vmem:[#allocation3 + $0x78] sm:$0xff]
    %v802 = vld [vmem:[#allocation3 + $0x80] sm:$0xff]
    %v803 = vld [vmem:[#allocation3 + $0x88] sm:$0xff]
    %v804 = vld [vmem:[#allocation3 + $0x90] sm:$0xff]
    %v805 = vld [vmem:[#allocation3 + $0x98] sm:$0xff]
    %v806 = vld [vmem:[#allocation3 + $0xa0] sm:$0xff]
    %v807 = vld [vmem:[#allocation3 + $0xa8] sm:$0xff]
    %v808 = vld [vmem:[#allocation3 + $0xb0] sm:$0xff]
    %v809 = vld [vmem:[#allocation3 + $0xb8] sm:$0xff]
    %v810 = vld [vmem:[#allocation3 + $0xc0] sm:$0xff]
    %v811 = vld [vmem:[#allocation3 + $0xc8] sm:$0xff]
    %v812 = vld [vmem:[#allocation3 + $0xd0] sm:$0xff]
    %v813 = vld [vmem:[#allocation3 + $0xd8] sm:$0xff]
    %v814 = vld [vmem:[#allocation3 + $0xe0] sm:$0xff]
    %v815 = vld [vmem:[#allocation3 + $0xe8] sm:$0xff]
    %v816 = vld [vmem:[#allocation3 + $0xf0] sm:$0xff]
    %v817 = vld [vmem:[#allocation3 + $0xf8] sm:$0xff]
    %v818 = vld [vmem:[#allocation10] sm:$0xff]
    %v819 = vld [vmem:[#allocation10 + $0x8] sm:$0xff]
    %v820 = vld [vmem:[#allocation10 + $0x10] sm:$0xff]
    %v821 = vld [vmem:[#allocation10 + $0x18] sm:$0xff]
    %v822 = vld [vmem:[#allocation10 + $0x20] sm:$0xff]
    %v823 = vld [vmem:[#allocation10 + $0x28] sm:$0xff]
    %v824 = vld [vmem:[#allocation10 + $0x30] sm:$0xff]
    %v825 = vld [vmem:[#allocation10 + $0x38] sm:$0xff]
    %v826 = vld [vmem:[#allocation10 + $0x40] sm:$0xff]
    %v827 = vld [vmem:[#allocation10 + $0x48] sm:$0xff]
    %v828 = vld [vmem:[#allocation10 + $0x50] sm:$0xff]
    %v829 = vld [vmem:[#allocation10 + $0x58] sm:$0xff]
    %v830 = vld [vmem:[#allocation10 + $0x60] sm:$0xff]
    %v831 = vld [vmem:[#allocation10 + $0x68] sm:$0xff]
    %v832 = vld [vmem:[#allocation10 + $0x70] sm:$0xff]
    %v833 = vld [vmem:[#allocation10 + $0x78] sm:$0xff]
    %v834 = vld [vmem:[#allocation10 + $0x80] sm:$0xff]
    %v835 = vld [vmem:[#allocation10 + $0x88] sm:$0xff]
    %v836 = vld [vmem:[#allocation10 + $0x90] sm:$0xff]
    %v837 = vld [vmem:[#allocation10 + $0x98] sm:$0xff]
    %v838 = vld [vmem:[#allocation10 + $0xa0] sm:$0xff]
    %v839 = vld [vmem:[#allocation10 + $0xa8] sm:$0xff]
    %v840 = vld [vmem:[#allocation10 + $0xb0] sm:$0xff]
    %v841 = vld [vmem:[#allocation10 + $0xb8] sm:$0xff]
    %v842 = vld [vmem:[#allocation10 + $0xc0] sm:$0xff]
    %v843 = vld [vmem:[#allocation10 + $0xc8] sm:$0xff]
    %v844 = vld [vmem:[#allocation10 + $0xd0] sm:$0xff]
    %v845 = vld [vmem:[#allocation10 + $0xd8] sm:$0xff]
    %v846 = vld [vmem:[#allocation10 + $0xe0] sm:$0xff]
    %v847 = vld [vmem:[#allocation10 + $0xe8] sm:$0xff]
    %v848 = vld [vmem:[#allocation10 + $0xf0] sm:$0xff]
    %v849 = vld [vmem:[#allocation10 + $0xf8] sm:$0xff]
    %850 = vmatprep.subr.mxu0 %v849
    %851 = vmatpush1.xpose.msra.mxu0 %v848
    %852 = vmatprep.subr.mxu0 %v847
    %853 = vmatpush1.xpose.msra.mxu0 %v846
    %854 = vmatprep.subr.mxu0 %v845
    %855 = vmatpush1.xpose.msra.mxu0 %v844
    %856 = vmatprep.subr.mxu0 %v843
    %857 = vmatpush1.xpose.msra.mxu0 %v842
    %858 = vmatprep.subr.mxu0 %v841
    %859 = vmatpush1.xpose.msra.mxu0 %v840
    %860 = vmatprep.subr.mxu0 %v839
    %861 = vmatpush1.xpose.msra.mxu0 %v838
    %862 = vmatprep.subr.mxu0 %v837
    %863 = vmatpush1.xpose.msra.mxu0 %v836
    %864 = vmatprep.subr.mxu0 %v835
    %865 = vmatpush1.xpose.msra.mxu0 %v834
    %866 = vmatprep.subr.mxu0 %v833
    %867 = vmatpush1.xpose.msra.mxu0 %v832
    %868 = vmatprep.subr.mxu0 %v831
    %869 = vmatpush1.xpose.msra.mxu0 %v830
    %870 = vmatprep.subr.mxu0 %v829
    %871 = vmatpush1.xpose.msra.mxu0 %v828
    %872 = vmatprep.subr.mxu0 %v827
    %873 = vmatpush1.xpose.msra.mxu0 %v826
    %874 = vmatprep.subr.mxu0 %v825
    %875 = vmatpush1.xpose.msra.mxu0 %v824
    %876 = vmatprep.subr.mxu0 %v823
    %877 = vmatpush1.xpose.msra.mxu0 %v822
    %878 = vmatprep.subr.mxu0 %v821
    %879 = vmatpush1.xpose.msra.mxu0 %v820
    %880 = vmatprep.subr.mxu0 %v819
    %881 = vmatpush1.xpose.msra.mxu0 %v818
    %882 = vmatprep.subr.mxu0 0.0
    %883 = vmatpush2.xpose.msra.mxu0 0.0
    %884 = vmatprep.subr.mxu0 0.0
    %885 = vmatpush2.xpose.msra.mxu0 0.0
    %886 = vmatprep.subr.mxu0 0.0
    %887 = vmatpush2.xpose.msra.mxu0 0.0
    %888 = vmatprep.subr.mxu0 0.0
    %889 = vmatpush2.xpose.msra.mxu0 0.0
    %890 = vmatprep.subr.mxu0 0.0
    %891 = vmatpush2.xpose.msra.mxu0 0.0
    %892 = vmatprep.subr.mxu0 0.0
    %893 = vmatpush2.xpose.msra.mxu0 0.0
    %894 = vmatprep.subr.mxu0 0.0
    %895 = vmatpush2.xpose.msra.mxu0 0.0
    %896 = vmatprep.subr.mxu0 0.0
    %897 = vmatpush2.xpose.msra.mxu0 0.0
    %898 = vmatprep.subr.mxu0 0.0
    %899 = vmatpush2.xpose.msra.mxu0 0.0
    %900 = vmatprep.subr.mxu0 0.0
    %901 = vmatpush2.xpose.msra.mxu0 0.0
    %902 = vmatprep.subr.mxu0 0.0
    %903 = vmatpush2.xpose.msra.mxu0 0.0
    %904 = vmatprep.subr.mxu0 0.0
    %905 = vmatpush2.xpose.msra.mxu0 0.0
    %906 = vmatprep.subr.mxu0 0.0
    %907 = vmatpush2.xpose.msra.mxu0 0.0
    %908 = vmatprep.subr.mxu0 0.0
    %909 = vmatpush2.xpose.msra.mxu0 0.0
    %910 = vmatprep.subr.mxu0 0.0
    %911 = vmatpush2.xpose.msra.mxu0 0.0
    %912 = vmatprep.subr.mxu0 0.0
    %913 = vmatpush2.xpose.msra.mxu0 0.0
    %914 = vmatprep.mubr.f32.mxu0 %v210
    %915 = vmatmul.mubr.f32.gmra.mxu0 %v209
    %v916 = vpop.f32.mrf.mxu0
    %v917 = vadd.f32 0.0, %v916
    %v918 = vpop.f32.mrf.mxu0
    %919 = vmatprep.mubr.f32.mxu0 %v212
    %920 = vmatmul.mubr.f32.gmra.mxu0 %v211
    %v921 = vpop.f32.mrf.mxu0
    %v922 = vadd.f32 0.0, %v921
    %v923 = vpop.f32.mrf.mxu0
    %924 = vmatprep.mubr.f32.mxu0 %v214
    %925 = vmatmul.mubr.f32.gmra.mxu0 %v213
    %v926 = vpop.f32.mrf.mxu0
    %v927 = vadd.f32 0.0, %v926
    %v928 = vpop.f32.mrf.mxu0
    %929 = vmatprep.mubr.f32.mxu0 %v216
    %930 = vmatmul.mubr.f32.gmra.mxu0 %v215
    %v931 = vpop.f32.mrf.mxu0
    %v932 = vadd.f32 0.0, %v931
    %v933 = vpop.f32.mrf.mxu0
    %934 = vmatprep.mubr.f32.mxu0 %v218
    %935 = vmatmul.mubr.f32.gmra.mxu0 %v217
    %v936 = vpop.f32.mrf.mxu0
    %v937 = vadd.f32 0.0, %v936
    %v938 = vpop.f32.mrf.mxu0
    %939 = vmatprep.mubr.f32.mxu0 %v220
    %940 = vmatmul.mubr.f32.gmra.mxu0 %v219
    %v941 = vpop.f32.mrf.mxu0
    %v942 = vadd.f32 0.0, %v941
    %v943 = vpop.f32.mrf.mxu0
    %944 = vmatprep.mubr.f32.mxu0 %v222
    %945 = vmatmul.mubr.f32.gmra.mxu0 %v221
    %v946 = vpop.f32.mrf.mxu0
    %v947 = vadd.f32 0.0, %v946
    %v948 = vpop.f32.mrf.mxu0
    %949 = vmatprep.mubr.f32.mxu0 %v224
    %950 = vmatmul.mubr.f32.gmra.mxu0 %v223
    %v951 = vpop.f32.mrf.mxu0
    %v952 = vadd.f32 0.0, %v951
    %v953 = vpop.f32.mrf.mxu0
    %954 = vmatprep.mubr.f32.mxu0 %v226
    %955 = vmatmul.mubr.f32.gmra.mxu0 %v225
    %v956 = vpop.f32.mrf.mxu0
    %v957 = vadd.f32 0.0, %v956
    %v958 = vpop.f32.mrf.mxu0
    %959 = vmatprep.mubr.f32.mxu0 %v228
    %960 = vmatmul.mubr.f32.gmra.mxu0 %v227
    %v961 = vpop.f32.mrf.mxu0
    %v962 = vadd.f32 0.0, %v961
    %v963 = vpop.f32.mrf.mxu0
    %964 = vmatprep.mubr.f32.mxu0 %v230
    %965 = vmatmul.mubr.f32.gmra.mxu0 %v229
    %v966 = vpop.f32.mrf.mxu0
    %v967 = vadd.f32 0.0, %v966
    %v968 = vpop.f32.mrf.mxu0
    %969 = vmatprep.mubr.f32.mxu0 %v232
    %970 = vmatmul.mubr.f32.gmra.mxu0 %v231
    %v971 = vpop.f32.mrf.mxu0
    %v972 = vadd.f32 0.0, %v971
    %v973 = vpop.f32.mrf.mxu0
    %974 = vmatprep.mubr.f32.mxu0 %v234
    %975 = vmatmul.mubr.f32.gmra.mxu0 %v233
    %v976 = vpop.f32.mrf.mxu0
    %v977 = vadd.f32 0.0, %v976
    %v978 = vpop.f32.mrf.mxu0
    %979 = vmatprep.mubr.f32.mxu0 %v236
    %980 = vmatmul.mubr.f32.gmra.mxu0 %v235
    %v981 = vpop.f32.mrf.mxu0
    %v982 = vadd.f32 0.0, %v981
    %v983 = vpop.f32.mrf.mxu0
    %984 = vmatprep.mubr.f32.mxu0 %v238
    %985 = vmatmul.mubr.f32.gmra.mxu0 %v237
    %v986 = vpop.f32.mrf.mxu0
    %v987 = vadd.f32 0.0, %v986
    %v988 = vpop.f32.mrf.mxu0
    %989 = vmatprep.mubr.f32.mxu0 %v240
    %990 = vmatmul.mubr.f32.gmra.mxu0 %v239
    %v991 = vpop.f32.mrf.mxu0
    %v992 = vadd.f32 0.0, %v991
    %v993 = vpop.f32.mrf.mxu0
    %994 = vmatprep.mubr.f32.mxu0 %v242
    %995 = vmatmul.mubr.f32.gmra.mxu0 %v241
    %v996 = vpop.f32.mrf.mxu0
    %v997 = vadd.f32 0.0, %v996
    %v998 = vpop.f32.mrf.mxu0
    %999 = vmatprep.mubr.f32.mxu0 %v244
    %1000 = vmatmul.mubr.f32.gmra.mxu0 %v243
    %v1001 = vpop.f32.mrf.mxu0
    %v1002 = vadd.f32 0.0, %v1001
    %v1003 = vpop.f32.mrf.mxu0
    %1004 = vmatprep.mubr.f32.mxu0 %v246
    %1005 = vmatmul.mubr.f32.gmra.mxu0 %v245
    %v1006 = vpop.f32.mrf.mxu0
    %v1007 = vadd.f32 0.0, %v1006
    %v1008 = vpop.f32.mrf.mxu0
    %1009 = vmatprep.mubr.f32.mxu0 %v248
    %1010 = vmatmul.mubr.f32.gmra.mxu0 %v247
    %v1011 = vpop.f32.mrf.mxu0
    %v1012 = vadd.f32 0.0, %v1011
    %v1013 = vpop.f32.mrf.mxu0
    %1014 = vmatprep.mubr.f32.mxu0 %v250
    %1015 = vmatmul.mubr.f32.gmra.mxu0 %v249
    %v1016 = vpop.f32.mrf.mxu0
    %v1017 = vadd.f32 0.0, %v1016
    %v1018 = vpop.f32.mrf.mxu0
    %1019 = vmatprep.mubr.f32.mxu0 %v252
    %1020 = vmatmul.mubr.f32.gmra.mxu0 %v251
    %v1021 = vpop.f32.mrf.mxu0
    %v1022 = vadd.f32 0.0, %v1021
    %v1023 = vpop.f32.mrf.mxu0
    %1024 = vmatprep.mubr.f32.mxu0 %v254
    %1025 = vmatmul.mubr.f32.gmra.mxu0 %v253
    %v1026 = vpop.f32.mrf.mxu0
    %v1027 = vadd.f32 0.0, %v1026
    %v1028 = vpop.f32.mrf.mxu0
    %1029 = vmatprep.mubr.f32.mxu0 %v256
    %1030 = vmatmul.mubr.f32.gmra.mxu0 %v255
    %v1031 = vpop.f32.mrf.mxu0
    %v1032 = vadd.f32 0.0, %v1031
    %v1033 = vpop.f32.mrf.mxu0
    %1034 = vmatprep.mubr.f32.mxu0 %v258
    %1035 = vmatmul.mubr.f32.gmra.mxu0 %v257
    %v1036 = vpop.f32.mrf.mxu0
    %v1037 = vadd.f32 0.0, %v1036
    %v1038 = vpop.f32.mrf.mxu0
    %1039 = vmatprep.mubr.f32.mxu0 %v260
    %1040 = vmatmul.mubr.f32.gmra.mxu0 %v259
    %v1041 = vpop.f32.mrf.mxu0
    %v1042 = vadd.f32 0.0, %v1041
    %v1043 = vpop.f32.mrf.mxu0
    %1044 = vmatprep.mubr.f32.mxu0 %v262
    %1045 = vmatmul.mubr.f32.gmra.mxu0 %v261
    %v1046 = vpop.f32.mrf.mxu0
    %v1047 = vadd.f32 0.0, %v1046
    %v1048 = vpop.f32.mrf.mxu0
    %1049 = vmatprep.mubr.f32.mxu0 %v264
    %1050 = vmatmul.mubr.f32.gmra.mxu0 %v263
    %v1051 = vpop.f32.mrf.mxu0
    %v1052 = vadd.f32 0.0, %v1051
    %v1053 = vpop.f32.mrf.mxu0
    %1054 = vmatprep.mubr.f32.mxu0 %v266
    %1055 = vmatmul.mubr.f32.gmra.mxu0 %v265
    %v1056 = vpop.f32.mrf.mxu0
    %v1057 = vadd.f32 0.0, %v1056
    %v1058 = vpop.f32.mrf.mxu0
    %1059 = vmatprep.mubr.f32.mxu0 %v268
    %1060 = vmatmul.mubr.f32.gmra.mxu0 %v267
    %v1061 = vpop.f32.mrf.mxu0
    %v1062 = vadd.f32 0.0, %v1061
    %v1063 = vpop.f32.mrf.mxu0
    %1064 = vmatprep.mubr.f32.mxu0 %v270
    %1065 = vmatmul.mubr.f32.gmra.mxu0 %v269
    %v1066 = vpop.f32.mrf.mxu0
    %v1067 = vadd.f32 0.0, %v1066
    %v1068 = vpop.f32.mrf.mxu0
    %1069 = vmatprep.mubr.f32.mxu0 %v272
    %1070 = vmatmul.mubr.f32.gmra.mxu0 %v271
    %v1071 = vpop.f32.mrf.mxu0
    %v1072 = vadd.f32 0.0, %v1071
    %v1073 = vpop.f32.mrf.mxu0
    %1074 = vdwg.mxu0
    %v1075 = vadd.f32 %v786, %v917
    %v1076 = vadd.f32 %v787, %v922
    %v1077 = vadd.f32 %v788, %v927
    %v1078 = vadd.f32 %v789, %v932
    %v1079 = vadd.f32 %v790, %v937
    %v1080 = vadd.f32 %v791, %v942
    %v1081 = vadd.f32 %v792, %v947
    %v1082 = vadd.f32 %v793, %v952
    %v1083 = vadd.f32 %v794, %v957
    %v1084 = vadd.f32 %v795, %v962
    %v1085 = vadd.f32 %v796, %v967
    %v1086 = vadd.f32 %v797, %v972
    %v1087 = vadd.f32 %v798, %v977
    %v1088 = vadd.f32 %v799, %v982
    %v1089 = vadd.f32 %v800, %v987
    %v1090 = vadd.f32 %v801, %v992
    %v1091 = vadd.f32 %v802, %v997
    %v1092 = vadd.f32 %v803, %v1002
    %v1093 = vadd.f32 %v804, %v1007
    %v1094 = vadd.f32 %v805, %v1012
    %v1095 = vadd.f32 %v806, %v1017
    %v1096 = vadd.f32 %v807, %v1022
    %v1097 = vadd.f32 %v808, %v1027
    %v1098 = vadd.f32 %v809, %v1032
    %v1099 = vadd.f32 %v810, %v1037
    %v1100 = vadd.f32 %v811, %v1042
    %v1101 = vadd.f32 %v812, %v1047
    %v1102 = vadd.f32 %v813, %v1052
    %v1103 = vadd.f32 %v814, %v1057
    %v1104 = vadd.f32 %v815, %v1062
    %v1105 = vadd.f32 %v816, %v1067
    %v1106 = vadd.f32 %v817, %v1072
    %1107 = vst [vmem:[#allocation3] sm:$0xff] %v1075
    %1108 = vst [vmem:[#allocation3 + $0x8] sm:$0xff] %v1076
    %1109 = vst [vmem:[#allocation3 + $0x10] sm:$0xff] %v1077
    %1110 = vst [vmem:[#allocation3 + $0x18] sm:$0xff] %v1078
    %1111 = vst [vmem:[#allocation3 + $0x20] sm:$0xff] %v1079
    %1112 = vst [vmem:[#allocation3 + $0x28] sm:$0xff] %v1080
    %1113 = vst [vmem:[#allocation3 + $0x30] sm:$0xff] %v1081
    %1114 = vst [vmem:[#allocation3 + $0x38] sm:$0xff] %v1082
    %1115 = vst [vmem:[#allocation3 + $0x40] sm:$0xff] %v1083
    %1116 = vst [vmem:[#allocation3 + $0x48] sm:$0xff] %v1084
    %1117 = vst [vmem:[#allocation3 + $0x50] sm:$0xff] %v1085
    %1118 = vst [vmem:[#allocation3 + $0x58] sm:$0xff] %v1086
    %1119 = vst [vmem:[#allocation3 + $0x60] sm:$0xff] %v1087
    %1120 = vst [vmem:[#allocation3 + $0x68] sm:$0xff] %v1088
    %1121 = vst [vmem:[#allocation3 + $0x70] sm:$0xff] %v1089
    %1122 = vst [vmem:[#allocation3 + $0x78] sm:$0xff] %v1090
    %1123 = vst [vmem:[#allocation3 + $0x80] sm:$0xff] %v1091
    %1124 = vst [vmem:[#allocation3 + $0x88] sm:$0xff] %v1092
    %1125 = vst [vmem:[#allocation3 + $0x90] sm:$0xff] %v1093
    %1126 = vst [vmem:[#allocation3 + $0x98] sm:$0xff] %v1094
    %1127 = vst [vmem:[#allocation3 + $0xa0] sm:$0xff] %v1095
    %1128 = vst [vmem:[#allocation3 + $0xa8] sm:$0xff] %v1096
    %1129 = vst [vmem:[#allocation3 + $0xb0] sm:$0xff] %v1097
    %1130 = vst [vmem:[#allocation3 + $0xb8] sm:$0xff] %v1098
    %1131 = vst [vmem:[#allocation3 + $0xc0] sm:$0xff] %v1099
    %1132 = vst [vmem:[#allocation3 + $0xc8] sm:$0xff] %v1100
    %1133 = vst [vmem:[#allocation3 + $0xd0] sm:$0xff] %v1101
    %1134 = vst [vmem:[#allocation3 + $0xd8] sm:$0xff] %v1102
    %1135 = vst [vmem:[#allocation3 + $0xe0] sm:$0xff] %v1103
    %1136 = vst [vmem:[#allocation3 + $0xe8] sm:$0xff] %v1104
    %1137 = vst [vmem:[#allocation3 + $0xf0] sm:$0xff] %v1105
    %1138 = vst [vmem:[#allocation3 + $0xf8] sm:$0xff] %v1106
    %v1139 = vld [vmem:[#allocation4] sm:$0xff]
    %v1140 = vld [vmem:[#allocation4 + $0x8] sm:$0xff]
    %v1141 = vld [vmem:[#allocation4 + $0x10] sm:$0xff]
    %v1142 = vld [vmem:[#allocation4 + $0x18] sm:$0xff]
    %v1143 = vld [vmem:[#allocation4 + $0x20] sm:$0xff]
    %v1144 = vld [vmem:[#allocation4 + $0x28] sm:$0xff]
    %v1145 = vld [vmem:[#allocation4 + $0x30] sm:$0xff]
    %v1146 = vld [vmem:[#allocation4 + $0x38] sm:$0xff]
    %v1147 = vld [vmem:[#allocation4 + $0x40] sm:$0xff]
    %v1148 = vld [vmem:[#allocation4 + $0x48] sm:$0xff]
    %v1149 = vld [vmem:[#allocation4 + $0x50] sm:$0xff]
    %v1150 = vld [vmem:[#allocation4 + $0x58] sm:$0xff]
    %v1151 = vld [vmem:[#allocation4 + $0x60] sm:$0xff]
    %v1152 = vld [vmem:[#allocation4 + $0x68] sm:$0xff]
    %v1153 = vld [vmem:[#allocation4 + $0x70] sm:$0xff]
    %v1154 = vld [vmem:[#allocation4 + $0x78] sm:$0xff]
    %v1155 = vld [vmem:[#allocation4 + $0x80] sm:$0xff]
    %v1156 = vld [vmem:[#allocation4 + $0x88] sm:$0xff]
    %v1157 = vld [vmem:[#allocation4 + $0x90] sm:$0xff]
    %v1158 = vld [vmem:[#allocation4 + $0x98] sm:$0xff]
    %v1159 = vld [vmem:[#allocation4 + $0xa0] sm:$0xff]
    %v1160 = vld [vmem:[#allocation4 + $0xa8] sm:$0xff]
    %v1161 = vld [vmem:[#allocation4 + $0xb0] sm:$0xff]
    %v1162 = vld [vmem:[#allocation4 + $0xb8] sm:$0xff]
    %v1163 = vld [vmem:[#allocation4 + $0xc0] sm:$0xff]
    %v1164 = vld [vmem:[#allocation4 + $0xc8] sm:$0xff]
    %v1165 = vld [vmem:[#allocation4 + $0xd0] sm:$0xff]
    %v1166 = vld [vmem:[#allocation4 + $0xd8] sm:$0xff]
    %v1167 = vld [vmem:[#allocation4 + $0xe0] sm:$0xff]
    %v1168 = vld [vmem:[#allocation4 + $0xe8] sm:$0xff]
    %v1169 = vld [vmem:[#allocation4 + $0xf0] sm:$0xff]
    %v1170 = vld [vmem:[#allocation4 + $0xf8] sm:$0xff]
    %v1171 = vld [vmem:[#allocation11] sm:$0xff]
    %v1172 = vld [vmem:[#allocation11 + $0x8] sm:$0xff]
    %v1173 = vld [vmem:[#allocation11 + $0x10] sm:$0xff]
    %v1174 = vld [vmem:[#allocation11 + $0x18] sm:$0xff]
    %v1175 = vld [vmem:[#allocation11 + $0x20] sm:$0xff]
    %v1176 = vld [vmem:[#allocation11 + $0x28] sm:$0xff]
    %v1177 = vld [vmem:[#allocation11 + $0x30] sm:$0xff]
    %v1178 = vld [vmem:[#allocation11 + $0x38] sm:$0xff]
    %v1179 = vld [vmem:[#allocation11 + $0x40] sm:$0xff]
    %v1180 = vld [vmem:[#allocation11 + $0x48] sm:$0xff]
    %v1181 = vld [vmem:[#allocation11 + $0x50] sm:$0xff]
    %v1182 = vld [vmem:[#allocation11 + $0x58] sm:$0xff]
    %v1183 = vld [vmem:[#allocation11 + $0x60] sm:$0xff]
    %v1184 = vld [vmem:[#allocation11 + $0x68] sm:$0xff]
    %v1185 = vld [vmem:[#allocation11 + $0x70] sm:$0xff]
    %v1186 = vld [vmem:[#allocation11 + $0x78] sm:$0xff]
    %v1187 = vld [vmem:[#allocation11 + $0x80] sm:$0xff]
    %v1188 = vld [vmem:[#allocation11 + $0x88] sm:$0xff]
    %v1189 = vld [vmem:[#allocation11 + $0x90] sm:$0xff]
    %v1190 = vld [vmem:[#allocation11 + $0x98] sm:$0xff]
    %v1191 = vld [vmem:[#allocation11 + $0xa0] sm:$0xff]
    %v1192 = vld [vmem:[#allocation11 + $0xa8] sm:$0xff]
    %v1193 = vld [vmem:[#allocation11 + $0xb0] sm:$0xff]
    %v1194 = vld [vmem:[#allocation11 + $0xb8] sm:$0xff]
    %v1195 = vld [vmem:[#allocation11 + $0xc0] sm:$0xff]
    %v1196 = vld [vmem:[#allocation11 + $0xc8] sm:$0xff]
    %v1197 = vld [vmem:[#allocation11 + $0xd0] sm:$0xff]
    %v1198 = vld [vmem:[#allocation11 + $0xd8] sm:$0xff]
    %v1199 = vld [vmem:[#allocation11 + $0xe0] sm:$0xff]
    %v1200 = vld [vmem:[#allocation11 + $0xe8] sm:$0xff]
    %v1201 = vld [vmem:[#allocation11 + $0xf0] sm:$0xff]
    %v1202 = vld [vmem:[#allocation11 + $0xf8] sm:$0xff]
    %1203 = vmatprep.subr.mxu0 %v1202
    %1204 = vmatpush1.xpose.msra.mxu0 %v1201
    %1205 = vmatprep.subr.mxu0 %v1200
    %1206 = vmatpush1.xpose.msra.mxu0 %v1199
    %1207 = vmatprep.subr.mxu0 %v1198
    %1208 = vmatpush1.xpose.msra.mxu0 %v1197
    %1209 = vmatprep.subr.mxu0 %v1196
    %1210 = vmatpush1.xpose.msra.mxu0 %v1195
    %1211 = vmatprep.subr.mxu0 %v1194
    %1212 = vmatpush1.xpose.msra.mxu0 %v1193
    %1213 = vmatprep.subr.mxu0 %v1192
    %1214 = vmatpush1.xpose.msra.mxu0 %v1191
    %1215 = vmatprep.subr.mxu0 %v1190
    %1216 = vmatpush1.xpose.msra.mxu0 %v1189
    %1217 = vmatprep.subr.mxu0 %v1188
    %1218 = vmatpush1.xpose.msra.mxu0 %v1187
    %1219 = vmatprep.subr.mxu0 %v1186
    %1220 = vmatpush1.xpose.msra.mxu0 %v1185
    %1221 = vmatprep.subr.mxu0 %v1184
    %1222 = vmatpush1.xpose.msra.mxu0 %v1183
    %1223 = vmatprep.subr.mxu0 %v1182
    %1224 = vmatpush1.xpose.msra.mxu0 %v1181
    %1225 = vmatprep.subr.mxu0 %v1180
    %1226 = vmatpush1.xpose.msra.mxu0 %v1179
    %1227 = vmatprep.subr.mxu0 %v1178
    %1228 = vmatpush1.xpose.msra.mxu0 %v1177
    %1229 = vmatprep.subr.mxu0 %v1176
    %1230 = vmatpush1.xpose.msra.mxu0 %v1175
    %1231 = vmatprep.subr.mxu0 %v1174
    %1232 = vmatpush1.xpose.msra.mxu0 %v1173
    %1233 = vmatprep.subr.mxu0 %v1172
    %1234 = vmatpush1.xpose.msra.mxu0 %v1171
    %1235 = vmatprep.subr.mxu0 0.0
    %1236 = vmatpush2.xpose.msra.mxu0 0.0
    %1237 = vmatprep.subr.mxu0 0.0
    %1238 = vmatpush2.xpose.msra.mxu0 0.0
    %1239 = vmatprep.subr.mxu0 0.0
    %1240 = vmatpush2.xpose.msra.mxu0 0.0
    %1241 = vmatprep.subr.mxu0 0.0
    %1242 = vmatpush2.xpose.msra.mxu0 0.0
    %1243 = vmatprep.subr.mxu0 0.0
    %1244 = vmatpush2.xpose.msra.mxu0 0.0
    %1245 = vmatprep.subr.mxu0 0.0
    %1246 = vmatpush2.xpose.msra.mxu0 0.0
    %1247 = vmatprep.subr.mxu0 0.0
    %1248 = vmatpush2.xpose.msra.mxu0 0.0
    %1249 = vmatprep.subr.mxu0 0.0
    %1250 = vmatpush2.xpose.msra.mxu0 0.0
    %1251 = vmatprep.subr.mxu0 0.0
    %1252 = vmatpush2.xpose.msra.mxu0 0.0
    %1253 = vmatprep.subr.mxu0 0.0
    %1254 = vmatpush2.xpose.msra.mxu0 0.0
    %1255 = vmatprep.subr.mxu0 0.0
    %1256 = vmatpush2.xpose.msra.mxu0 0.0
    %1257 = vmatprep.subr.mxu0 0.0
    %1258 = vmatpush2.xpose.msra.mxu0 0.0
    %1259 = vmatprep.subr.mxu0 0.0
    %1260 = vmatpush2.xpose.msra.mxu0 0.0
    %1261 = vmatprep.subr.mxu0 0.0
    %1262 = vmatpush2.xpose.msra.mxu0 0.0
    %1263 = vmatprep.subr.mxu0 0.0
    %1264 = vmatpush2.xpose.msra.mxu0 0.0
    %1265 = vmatprep.subr.mxu0 0.0
    %1266 = vmatpush2.xpose.msra.mxu0 0.0
    %1267 = vmatprep.mubr.f32.mxu0 %v210
    %1268 = vmatmul.mubr.f32.gmra.mxu0 %v209
    %v1269 = vpop.f32.mrf.mxu0
    %v1270 = vadd.f32 0.0, %v1269
    %v1271 = vpop.f32.mrf.mxu0
    %1272 = vmatprep.mubr.f32.mxu0 %v212
    %1273 = vmatmul.mubr.f32.gmra.mxu0 %v211
    %v1274 = vpop.f32.mrf.mxu0
    %v1275 = vadd.f32 0.0, %v1274
    %v1276 = vpop.f32.mrf.mxu0
    %1277 = vmatprep.mubr.f32.mxu0 %v214
    %1278 = vmatmul.mubr.f32.gmra.mxu0 %v213
    %v1279 = vpop.f32.mrf.mxu0
    %v1280 = vadd.f32 0.0, %v1279
    %v1281 = vpop.f32.mrf.mxu0
    %1282 = vmatprep.mubr.f32.mxu0 %v216
    %1283 = vmatmul.mubr.f32.gmra.mxu0 %v215
    %v1284 = vpop.f32.mrf.mxu0
    %v1285 = vadd.f32 0.0, %v1284
    %v1286 = vpop.f32.mrf.mxu0
    %1287 = vmatprep.mubr.f32.mxu0 %v218
    %1288 = vmatmul.mubr.f32.gmra.mxu0 %v217
    %v1289 = vpop.f32.mrf.mxu0
    %v1290 = vadd.f32 0.0, %v1289
    %v1291 = vpop.f32.mrf.mxu0
    %1292 = vmatprep.mubr.f32.mxu0 %v220
    %1293 = vmatmul.mubr.f32.gmra.mxu0 %v219
    %v1294 = vpop.f32.mrf.mxu0
    %v1295 = vadd.f32 0.0, %v1294
    %v1296 = vpop.f32.mrf.mxu0
    %1297 = vmatprep.mubr.f32.mxu0 %v222
    %1298 = vmatmul.mubr.f32.gmra.mxu0 %v221
    %v1299 = vpop.f32.mrf.mxu0
    %v1300 = vadd.f32 0.0, %v1299
    %v1301 = vpop.f32.mrf.mxu0
    %1302 = vmatprep.mubr.f32.mxu0 %v224
    %1303 = vmatmul.mubr.f32.gmra.mxu0 %v223
    %v1304 = vpop.f32.mrf.mxu0
    %v1305 = vadd.f32 0.0, %v1304
    %v1306 = vpop.f32.mrf.mxu0
    %1307 = vmatprep.mubr.f32.mxu0 %v226
    %1308 = vmatmul.mubr.f32.gmra.mxu0 %v225
    %v1309 = vpop.f32.mrf.mxu0
    %v1310 = vadd.f32 0.0, %v1309
    %v1311 = vpop.f32.mrf.mxu0
    %1312 = vmatprep.mubr.f32.mxu0 %v228
    %1313 = vmatmul.mubr.f32.gmra.mxu0 %v227
    %v1314 = vpop.f32.mrf.mxu0
    %v1315 = vadd.f32 0.0, %v1314
    %v1316 = vpop.f32.mrf.mxu0
    %1317 = vmatprep.mubr.f32.mxu0 %v230
    %1318 = vmatmul.mubr.f32.gmra.mxu0 %v229
    %v1319 = vpop.f32.mrf.mxu0
    %v1320 = vadd.f32 0.0, %v1319
    %v1321 = vpop.f32.mrf.mxu0
    %1322 = vmatprep.mubr.f32.mxu0 %v232
    %1323 = vmatmul.mubr.f32.gmra.mxu0 %v231
    %v1324 = vpop.f32.mrf.mxu0
    %v1325 = vadd.f32 0.0, %v1324
    %v1326 = vpop.f32.mrf.mxu0
    %1327 = vmatprep.mubr.f32.mxu0 %v234
    %1328 = vmatmul.mubr.f32.gmra.mxu0 %v233
    %v1329 = vpop.f32.mrf.mxu0
    %v1330 = vadd.f32 0.0, %v1329
    %v1331 = vpop.f32.mrf.mxu0
    %1332 = vmatprep.mubr.f32.mxu0 %v236
    %1333 = vmatmul.mubr.f32.gmra.mxu0 %v235
    %v1334 = vpop.f32.mrf.mxu0
    %v1335 = vadd.f32 0.0, %v1334
    %v1336 = vpop.f32.mrf.mxu0
    %1337 = vmatprep.mubr.f32.mxu0 %v238
    %1338 = vmatmul.mubr.f32.gmra.mxu0 %v237
    %v1339 = vpop.f32.mrf.mxu0
    %v1340 = vadd.f32 0.0, %v1339
    %v1341 = vpop.f32.mrf.mxu0
    %1342 = vmatprep.mubr.f32.mxu0 %v240
    %1343 = vmatmul.mubr.f32.gmra.mxu0 %v239
    %v1344 = vpop.f32.mrf.mxu0
    %v1345 = vadd.f32 0.0, %v1344
    %v1346 = vpop.f32.mrf.mxu0
    %1347 = vmatprep.mubr.f32.mxu0 %v242
    %1348 = vmatmul.mubr.f32.gmra.mxu0 %v241
    %v1349 = vpop.f32.mrf.mxu0
    %v1350 = vadd.f32 0.0, %v1349
    %v1351 = vpop.f32.mrf.mxu0
    %1352 = vmatprep.mubr.f32.mxu0 %v244
    %1353 = vmatmul.mubr.f32.gmra.mxu0 %v243
    %v1354 = vpop.f32.mrf.mxu0
    %v1355 = vadd.f32 0.0, %v1354
    %v1356 = vpop.f32.mrf.mxu0
    %1357 = vmatprep.mubr.f32.mxu0 %v246
    %1358 = vmatmul.mubr.f32.gmra.mxu0 %v245
    %v1359 = vpop.f32.mrf.mxu0
    %v1360 = vadd.f32 0.0, %v1359
    %v1361 = vpop.f32.mrf.mxu0
    %1362 = vmatprep.mubr.f32.mxu0 %v248
    %1363 = vmatmul.mubr.f32.gmra.mxu0 %v247
    %v1364 = vpop.f32.mrf.mxu0
    %v1365 = vadd.f32 0.0, %v1364
    %v1366 = vpop.f32.mrf.mxu0
    %1367 = vmatprep.mubr.f32.mxu0 %v250
    %1368 = vmatmul.mubr.f32.gmra.mxu0 %v249
    %v1369 = vpop.f32.mrf.mxu0
    %v1370 = vadd.f32 0.0, %v1369
    %v1371 = vpop.f32.mrf.mxu0
    %1372 = vmatprep.mubr.f32.mxu0 %v252
    %1373 = vmatmul.mubr.f32.gmra.mxu0 %v251
    %v1374 = vpop.f32.mrf.mxu0
    %v1375 = vadd.f32 0.0, %v1374
    %v1376 = vpop.f32.mrf.mxu0
    %1377 = vmatprep.mubr.f32.mxu0 %v254
    %1378 = vmatmul.mubr.f32.gmra.mxu0 %v253
    %v1379 = vpop.f32.mrf.mxu0
    %v1380 = vadd.f32 0.0, %v1379
    %v1381 = vpop.f32.mrf.mxu0
    %1382 = vmatprep.mubr.f32.mxu0 %v256
    %1383 = vmatmul.mubr.f32.gmra.mxu0 %v255
    %v1384 = vpop.f32.mrf.mxu0
    %v1385 = vadd.f32 0.0, %v1384
    %v1386 = vpop.f32.mrf.mxu0
    %1387 = vmatprep.mubr.f32.mxu0 %v258
    %1388 = vmatmul.mubr.f32.gmra.mxu0 %v257
    %v1389 = vpop.f32.mrf.mxu0
    %v1390 = vadd.f32 0.0, %v1389
    %v1391 = vpop.f32.mrf.mxu0
    %1392 = vmatprep.mubr.f32.mxu0 %v260
    %1393 = vmatmul.mubr.f32.gmra.mxu0 %v259
    %v1394 = vpop.f32.mrf.mxu0
    %v1395 = vadd.f32 0.0, %v1394
    %v1396 = vpop.f32.mrf.mxu0
    %1397 = vmatprep.mubr.f32.mxu0 %v262
    %1398 = vmatmul.mubr.f32.gmra.mxu0 %v261
    %v1399 = vpop.f32.mrf.mxu0
    %v1400 = vadd.f32 0.0, %v1399
    %v1401 = vpop.f32.mrf.mxu0
    %1402 = vmatprep.mubr.f32.mxu0 %v264
    %1403 = vmatmul.mubr.f32.gmra.mxu0 %v263
    %v1404 = vpop.f32.mrf.mxu0
    %v1405 = vadd.f32 0.0, %v1404
    %v1406 = vpop.f32.mrf.mxu0
    %1407 = vmatprep.mubr.f32.mxu0 %v266
    %1408 = vmatmul.mubr.f32.gmra.mxu0 %v265
    %v1409 = vpop.f32.mrf.mxu0
    %v1410 = vadd.f32 0.0, %v1409
    %v1411 = vpop.f32.mrf.mxu0
    %1412 = vmatprep.mubr.f32.mxu0 %v268
    %1413 = vmatmul.mubr.f32.gmra.mxu0 %v267
    %v1414 = vpop.f32.mrf.mxu0
    %v1415 = vadd.f32 0.0, %v1414
    %v1416 = vpop.f32.mrf.mxu0
    %1417 = vmatprep.mubr.f32.mxu0 %v270
    %1418 = vmatmul.mubr.f32.gmra.mxu0 %v269
    %v1419 = vpop.f32.mrf.mxu0
    %v1420 = vadd.f32 0.0, %v1419
    %v1421 = vpop.f32.mrf.mxu0
    %1422 = vmatprep.mubr.f32.mxu0 %v272
    %1423 = vmatmul.mubr.f32.gmra.mxu0 %v271
    %v1424 = vpop.f32.mrf.mxu0
    %v1425 = vadd.f32 0.0, %v1424
    %v1426 = vpop.f32.mrf.mxu0
    %1427 = vdwg.mxu0
    %v1428 = vadd.f32 %v1139, %v1270
    %v1429 = vadd.f32 %v1140, %v1275
    %v1430 = vadd.f32 %v1141, %v1280
    %v1431 = vadd.f32 %v1142, %v1285
    %v1432 = vadd.f32 %v1143, %v1290
    %v1433 = vadd.f32 %v1144, %v1295
    %v1434 = vadd.f32 %v1145, %v1300
    %v1435 = vadd.f32 %v1146, %v1305
    %v1436 = vadd.f32 %v1147, %v1310
    %v1437 = vadd.f32 %v1148, %v1315
    %v1438 = vadd.f32 %v1149, %v1320
    %v1439 = vadd.f32 %v1150, %v1325
    %v1440 = vadd.f32 %v1151, %v1330
    %v1441 = vadd.f32 %v1152, %v1335
    %v1442 = vadd.f32 %v1153, %v1340
    %v1443 = vadd.f32 %v1154, %v1345
    %v1444 = vadd.f32 %v1155, %v1350
    %v1445 = vadd.f32 %v1156, %v1355
    %v1446 = vadd.f32 %v1157, %v1360
    %v1447 = vadd.f32 %v1158, %v1365
    %v1448 = vadd.f32 %v1159, %v1370
    %v1449 = vadd.f32 %v1160, %v1375
    %v1450 = vadd.f32 %v1161, %v1380
    %v1451 = vadd.f32 %v1162, %v1385
    %v1452 = vadd.f32 %v1163, %v1390
    %v1453 = vadd.f32 %v1164, %v1395
    %v1454 = vadd.f32 %v1165, %v1400
    %v1455 = vadd.f32 %v1166, %v1405
    %v1456 = vadd.f32 %v1167, %v1410
    %v1457 = vadd.f32 %v1168, %v1415
    %v1458 = vadd.f32 %v1169, %v1420
    %v1459 = vadd.f32 %v1170, %v1425
    %1460 = vst [vmem:[#allocation4] sm:$0xff] %v1428
    %1461 = vst [vmem:[#allocation4 + $0x8] sm:$0xff] %v1429
    %1462 = vst [vmem:[#allocation4 + $0x10] sm:$0xff] %v1430
    %1463 = vst [vmem:[#allocation4 + $0x18] sm:$0xff] %v1431
    %1464 = vst [vmem:[#allocation4 + $0x20] sm:$0xff] %v1432
    %1465 = vst [vmem:[#allocation4 + $0x28] sm:$0xff] %v1433
    %1466 = vst [vmem:[#allocation4 + $0x30] sm:$0xff] %v1434
    %1467 = vst [vmem:[#allocation4 + $0x38] sm:$0xff] %v1435
    %1468 = vst [vmem:[#allocation4 + $0x40] sm:$0xff] %v1436
    %1469 = vst [vmem:[#allocation4 + $0x48] sm:$0xff] %v1437
    %1470 = vst [vmem:[#allocation4 + $0x50] sm:$0xff] %v1438
    %1471 = vst [vmem:[#allocation4 + $0x58] sm:$0xff] %v1439
    %1472 = vst [vmem:[#allocation4 + $0x60] sm:$0xff] %v1440
    %1473 = vst [vmem:[#allocation4 + $0x68] sm:$0xff] %v1441
    %1474 = vst [vmem:[#allocation4 + $0x70] sm:$0xff] %v1442
    %1475 = vst [vmem:[#allocation4 + $0x78] sm:$0xff] %v1443
    %1476 = vst [vmem:[#allocation4 + $0x80] sm:$0xff] %v1444
    %1477 = vst [vmem:[#allocation4 + $0x88] sm:$0xff] %v1445
    %1478 = vst [vmem:[#allocation4 + $0x90] sm:$0xff] %v1446
    %1479 = vst [vmem:[#allocation4 + $0x98] sm:$0xff] %v1447
    %1480 = vst [vmem:[#allocation4 + $0xa0] sm:$0xff] %v1448
    %1481 = vst [vmem:[#allocation4 + $0xa8] sm:$0xff] %v1449
    %1482 = vst [vmem:[#allocation4 + $0xb0] sm:$0xff] %v1450
    %1483 = vst [vmem:[#allocation4 + $0xb8] sm:$0xff] %v1451
    %1484 = vst [vmem:[#allocation4 + $0xc0] sm:$0xff] %v1452
    %1485 = vst [vmem:[#allocation4 + $0xc8] sm:$0xff] %v1453
    %1486 = vst [vmem:[#allocation4 + $0xd0] sm:$0xff] %v1454
    %1487 = vst [vmem:[#allocation4 + $0xd8] sm:$0xff] %v1455
    %1488 = vst [vmem:[#allocation4 + $0xe0] sm:$0xff] %v1456
    %1489 = vst [vmem:[#allocation4 + $0xe8] sm:$0xff] %v1457
    %1490 = vst [vmem:[#allocation4 + $0xf0] sm:$0xff] %v1458
    %1491 = vst [vmem:[#allocation4 + $0xf8] sm:$0xff] %v1459
    // Predicated region
    $region38: #{tpu_custom_call.1} parent=1 // pred_check
      %p1492 = pneg %p77
    $region39: #{tpu_custom_call.1} parent=1 // pred_check_branch
      %1494 = sbr.rel (%p1492) target = $region41
    $region40: #{tpu_custom_call.1} parent=1 // pred_region
      %v1495 = vld [vmem:[#allocation2] sm:$0xff]
      %v1496 = vld [vmem:[#allocation2 + $0x8] sm:$0xff]
      %v1497 = vld [vmem:[#allocation2 + $0x10] sm:$0xff]
      %v1498 = vld [vmem:[#allocation2 + $0x18] sm:$0xff]
      %v1499 = vld [vmem:[#allocation2 + $0x20] sm:$0xff]
      %v1500 = vld [vmem:[#allocation2 + $0x28] sm:$0xff]
      %v1501 = vld [vmem:[#allocation2 + $0x30] sm:$0xff]
      %v1502 = vld [vmem:[#allocation2 + $0x38] sm:$0xff]
      %v1503 = vld [vmem:[#allocation2 + $0x40] sm:$0xff]
      %v1504 = vld [vmem:[#allocation2 + $0x48] sm:$0xff]
      %v1505 = vld [vmem:[#allocation2 + $0x50] sm:$0xff]
      %v1506 = vld [vmem:[#allocation2 + $0x58] sm:$0xff]
      %v1507 = vld [vmem:[#allocation2 + $0x60] sm:$0xff]
      %v1508 = vld [vmem:[#allocation2 + $0x68] sm:$0xff]
      %v1509 = vld [vmem:[#allocation2 + $0x70] sm:$0xff]
      %v1510 = vld [vmem:[#allocation2 + $0x78] sm:$0xff]
      %v1511 = vld [vmem:[#allocation2 + $0x80] sm:$0xff]
      %v1512 = vld [vmem:[#allocation2 + $0x88] sm:$0xff]
      %v1513 = vld [vmem:[#allocation2 + $0x90] sm:$0xff]
      %v1514 = vld [vmem:[#allocation2 + $0x98] sm:$0xff]
      %v1515 = vld [vmem:[#allocation2 + $0xa0] sm:$0xff]
      %v1516 = vld [vmem:[#allocation2 + $0xa8] sm:$0xff]
      %v1517 = vld [vmem:[#allocation2 + $0xb0] sm:$0xff]
      %v1518 = vld [vmem:[#allocation2 + $0xb8] sm:$0xff]
      %v1519 = vld [vmem:[#allocation2 + $0xc0] sm:$0xff]
      %v1520 = vld [vmem:[#allocation2 + $0xc8] sm:$0xff]
      %v1521 = vld [vmem:[#allocation2 + $0xd0] sm:$0xff]
      %v1522 = vld [vmem:[#allocation2 + $0xd8] sm:$0xff]
      %v1523 = vld [vmem:[#allocation2 + $0xe0] sm:$0xff]
      %v1524 = vld [vmem:[#allocation2 + $0xe8] sm:$0xff]
      %v1525 = vld [vmem:[#allocation2 + $0xf0] sm:$0xff]
      %v1526 = vld [vmem:[#allocation2 + $0xf8] sm:$0xff]
      %v1527 = vld [vmem:[#allocation2 + $0x100] sm:$0xff]
      %v1528 = vld [vmem:[#allocation2 + $0x108] sm:$0xff]
      %v1529 = vld [vmem:[#allocation2 + $0x110] sm:$0xff]
      %v1530 = vld [vmem:[#allocation2 + $0x118] sm:$0xff]
      %v1531 = vld [vmem:[#allocation2 + $0x120] sm:$0xff]
      %v1532 = vld [vmem:[#allocation2 + $0x128] sm:$0xff]
      %v1533 = vld [vmem:[#allocation2 + $0x130] sm:$0xff]
      %v1534 = vld [vmem:[#allocation2 + $0x138] sm:$0xff]
      %v1535 = vld [vmem:[#allocation2 + $0x140] sm:$0xff]
      %v1536 = vld [vmem:[#allocation2 + $0x148] sm:$0xff]
      %v1537 = vld [vmem:[#allocation2 + $0x150] sm:$0xff]
      %v1538 = vld [vmem:[#allocation2 + $0x158] sm:$0xff]
      %v1539 = vld [vmem:[#allocation2 + $0x160] sm:$0xff]
      %v1540 = vld [vmem:[#allocation2 + $0x168] sm:$0xff]
      %v1541 = vld [vmem:[#allocation2 + $0x170] sm:$0xff]
      %v1542 = vld [vmem:[#allocation2 + $0x178] sm:$0xff]
      %v1543 = vld [vmem:[#allocation2 + $0x180] sm:$0xff]
      %v1544 = vld [vmem:[#allocation2 + $0x188] sm:$0xff]
      %v1545 = vld [vmem:[#allocation2 + $0x190] sm:$0xff]
      %v1546 = vld [vmem:[#allocation2 + $0x198] sm:$0xff]
      %v1547 = vld [vmem:[#allocation2 + $0x1a0] sm:$0xff]
      %v1548 = vld [vmem:[#allocation2 + $0x1a8] sm:$0xff]
      %v1549 = vld [vmem:[#allocation2 + $0x1b0] sm:$0xff]
      %v1550 = vld [vmem:[#allocation2 + $0x1b8] sm:$0xff]
      %v1551 = vld [vmem:[#allocation2 + $0x1c0] sm:$0xff]
      %v1552 = vld [vmem:[#allocation2 + $0x1c8] sm:$0xff]
      %v1553 = vld [vmem:[#allocation2 + $0x1d0] sm:$0xff]
      %v1554 = vld [vmem:[#allocation2 + $0x1d8] sm:$0xff]
      %v1555 = vld [vmem:[#allocation2 + $0x1e0] sm:$0xff]
      %v1556 = vld [vmem:[#allocation2 + $0x1e8] sm:$0xff]
      %v1557 = vld [vmem:[#allocation2 + $0x1f0] sm:$0xff]
      %v1558 = vld [vmem:[#allocation2 + $0x1f8] sm:$0xff]
      %1559 = vst [vmem:[#allocation13] sm:$0xff] %v1495
      %1560 = vst [vmem:[#allocation13 + $0x8] sm:$0xff] %v1496
      %1561 = vst [vmem:[#allocation13 + $0x10] sm:$0xff] %v1497
      %1562 = vst [vmem:[#allocation13 + $0x18] sm:$0xff] %v1498
      %1563 = vst [vmem:[#allocation13 + $0x20] sm:$0xff] %v1499
      %1564 = vst [vmem:[#allocation13 + $0x28] sm:$0xff] %v1500
      %1565 = vst [vmem:[#allocation13 + $0x30] sm:$0xff] %v1501
      %1566 = vst [vmem:[#allocation13 + $0x38] sm:$0xff] %v1502
      %1567 = vst [vmem:[#allocation13 + $0x40] sm:$0xff] %v1503
      %1568 = vst [vmem:[#allocation13 + $0x48] sm:$0xff] %v1504
      %1569 = vst [vmem:[#allocation13 + $0x50] sm:$0xff] %v1505
      %1570 = vst [vmem:[#allocation13 + $0x58] sm:$0xff] %v1506
      %1571 = vst [vmem:[#allocation13 + $0x60] sm:$0xff] %v1507
      %1572 = vst [vmem:[#allocation13 + $0x68] sm:$0xff] %v1508
      %1573 = vst [vmem:[#allocation13 + $0x70] sm:$0xff] %v1509
      %1574 = vst [vmem:[#allocation13 + $0x78] sm:$0xff] %v1510
      %1575 = vst [vmem:[#allocation13 + $0x80] sm:$0xff] %v1511
      %1576 = vst [vmem:[#allocation13 + $0x88] sm:$0xff] %v1512
      %1577 = vst [vmem:[#allocation13 + $0x90] sm:$0xff] %v1513
      %1578 = vst [vmem:[#allocation13 + $0x98] sm:$0xff] %v1514
      %1579 = vst [vmem:[#allocation13 + $0xa0] sm:$0xff] %v1515
      %1580 = vst [vmem:[#allocation13 + $0xa8] sm:$0xff] %v1516
      %1581 = vst [vmem:[#allocation13 + $0xb0] sm:$0xff] %v1517
      %1582 = vst [vmem:[#allocation13 + $0xb8] sm:$0xff] %v1518
      %1583 = vst [vmem:[#allocation13 + $0xc0] sm:$0xff] %v1519
      %1584 = vst [vmem:[#allocation13 + $0xc8] sm:$0xff] %v1520
      %1585 = vst [vmem:[#allocation13 + $0xd0] sm:$0xff] %v1521
      %1586 = vst [vmem:[#allocation13 + $0xd8] sm:$0xff] %v1522
      %1587 = vst [vmem:[#allocation13 + $0xe0] sm:$0xff] %v1523
      %1588 = vst [vmem:[#allocation13 + $0xe8] sm:$0xff] %v1524
      %1589 = vst [vmem:[#allocation13 + $0xf0] sm:$0xff] %v1525
      %1590 = vst [vmem:[#allocation13 + $0xf8] sm:$0xff] %v1526
      %1591 = vst [vmem:[#allocation13 + $0x100] sm:$0xff] %v1527
      %1592 = vst [vmem:[#allocation13 + $0x108] sm:$0xff] %v1528
      %1593 = vst [vmem:[#allocation13 + $0x110] sm:$0xff] %v1529
      %1594 = vst [vmem:[#allocation13 + $0x118] sm:$0xff] %v1530
      %1595 = vst [vmem:[#allocation13 + $0x120] sm:$0xff] %v1531
      %1596 = vst [vmem:[#allocation13 + $0x128] sm:$0xff] %v1532
      %1597 = vst [vmem:[#allocation13 + $0x130] sm:$0xff] %v1533
      %1598 = vst [vmem:[#allocation13 + $0x138] sm:$0xff] %v1534
      %1599 = vst [vmem:[#allocation13 + $0x140] sm:$0xff] %v1535
      %1600 = vst [vmem:[#allocation13 + $0x148] sm:$0xff] %v1536
      %1601 = vst [vmem:[#allocation13 + $0x150] sm:$0xff] %v1537
      %1602 = vst [vmem:[#allocation13 + $0x158] sm:$0xff] %v1538
      %1603 = vst [vmem:[#allocation13 + $0x160] sm:$0xff] %v1539
      %1604 = vst [vmem:[#allocation13 + $0x168] sm:$0xff] %v1540
      %1605 = vst [vmem:[#allocation13 + $0x170] sm:$0xff] %v1541
      %1606 = vst [vmem:[#allocation13 + $0x178] sm:$0xff] %v1542
      %1607 = vst [vmem:[#allocation13 + $0x180] sm:$0xff] %v1543
      %1608 = vst [vmem:[#allocation13 + $0x188] sm:$0xff] %v1544
      %1609 = vst [vmem:[#allocation13 + $0x190] sm:$0xff] %v1545
      %1610 = vst [vmem:[#allocation13 + $0x198] sm:$0xff] %v1546
      %1611 = vst [vmem:[#allocation13 + $0x1a0] sm:$0xff] %v1547
      %1612 = vst [vmem:[#allocation13 + $0x1a8] sm:$0xff] %v1548
      %1613 = vst [vmem:[#allocation13 + $0x1b0] sm:$0xff] %v1549
      %1614 = vst [vmem:[#allocation13 + $0x1b8] sm:$0xff] %v1550
      %1615 = vst [vmem:[#allocation13 + $0x1c0] sm:$0xff] %v1551
      %1616 = vst [vmem:[#allocation13 + $0x1c8] sm:$0xff] %v1552
      %1617 = vst [vmem:[#allocation13 + $0x1d0] sm:$0xff] %v1553
      %1618 = vst [vmem:[#allocation13 + $0x1d8] sm:$0xff] %v1554
      %1619 = vst [vmem:[#allocation13 + $0x1e0] sm:$0xff] %v1555
      %1620 = vst [vmem:[#allocation13 + $0x1e8] sm:$0xff] %v1556
      %1621 = vst [vmem:[#allocation13 + $0x1f0] sm:$0xff] %v1557
      %1622 = vst [vmem:[#allocation13 + $0x1f8] sm:$0xff] %v1558
      %v1623 = vld [vmem:[#allocation3] sm:$0xff]
      %v1624 = vld [vmem:[#allocation3 + $0x8] sm:$0xff]
      %v1625 = vld [vmem:[#allocation3 + $0x10] sm:$0xff]
      %v1626 = vld [vmem:[#allocation3 + $0x18] sm:$0xff]
      %v1627 = vld [vmem:[#allocation3 + $0x20] sm:$0xff]
      %v1628 = vld [vmem:[#allocation3 + $0x28] sm:$0xff]
      %v1629 = vld [vmem:[#allocation3 + $0x30] sm:$0xff]
      %v1630 = vld [vmem:[#allocation3 + $0x38] sm:$0xff]
      %v1631 = vld [vmem:[#allocation3 + $0x40] sm:$0xff]
      %v1632 = vld [vmem:[#allocation3 + $0x48] sm:$0xff]
      %v1633 = vld [vmem:[#allocation3 + $0x50] sm:$0xff]
      %v1634 = vld [vmem:[#allocation3 + $0x58] sm:$0xff]
      %v1635 = vld [vmem:[#allocation3 + $0x60] sm:$0xff]
      %v1636 = vld [vmem:[#allocation3 + $0x68] sm:$0xff]
      %v1637 = vld [vmem:[#allocation3 + $0x70] sm:$0xff]
      %v1638 = vld [vmem:[#allocation3 + $0x78] sm:$0xff]
      %v1639 = vld [vmem:[#allocation3 + $0x80] sm:$0xff]
      %v1640 = vld [vmem:[#allocation3 + $0x88] sm:$0xff]
      %v1641 = vld [vmem:[#allocation3 + $0x90] sm:$0xff]
      %v1642 = vld [vmem:[#allocation3 + $0x98] sm:$0xff]
      %v1643 = vld [vmem:[#allocation3 + $0xa0] sm:$0xff]
      %v1644 = vld [vmem:[#allocation3 + $0xa8] sm:$0xff]
      %v1645 = vld [vmem:[#allocation3 + $0xb0] sm:$0xff]
      %v1646 = vld [vmem:[#allocation3 + $0xb8] sm:$0xff]
      %v1647 = vld [vmem:[#allocation3 + $0xc0] sm:$0xff]
      %v1648 = vld [vmem:[#allocation3 + $0xc8] sm:$0xff]
      %v1649 = vld [vmem:[#allocation3 + $0xd0] sm:$0xff]
      %v1650 = vld [vmem:[#allocation3 + $0xd8] sm:$0xff]
      %v1651 = vld [vmem:[#allocation3 + $0xe0] sm:$0xff]
      %v1652 = vld [vmem:[#allocation3 + $0xe8] sm:$0xff]
      %v1653 = vld [vmem:[#allocation3 + $0xf0] sm:$0xff]
      %v1654 = vld [vmem:[#allocation3 + $0xf8] sm:$0xff]
      %1655 = vst [vmem:[#allocation14] sm:$0xff] %v1623
      %1656 = vst [vmem:[#allocation14 + $0x8] sm:$0xff] %v1624
      %1657 = vst [vmem:[#allocation14 + $0x10] sm:$0xff] %v1625
      %1658 = vst [vmem:[#allocation14 + $0x18] sm:$0xff] %v1626
      %1659 = vst [vmem:[#allocation14 + $0x20] sm:$0xff] %v1627
      %1660 = vst [vmem:[#allocation14 + $0x28] sm:$0xff] %v1628
      %1661 = vst [vmem:[#allocation14 + $0x30] sm:$0xff] %v1629
      %1662 = vst [vmem:[#allocation14 + $0x38] sm:$0xff] %v1630
      %1663 = vst [vmem:[#allocation14 + $0x40] sm:$0xff] %v1631
      %1664 = vst [vmem:[#allocation14 + $0x48] sm:$0xff] %v1632
      %1665 = vst [vmem:[#allocation14 + $0x50] sm:$0xff] %v1633
      %1666 = vst [vmem:[#allocation14 + $0x58] sm:$0xff] %v1634
      %1667 = vst [vmem:[#allocation14 + $0x60] sm:$0xff] %v1635
      %1668 = vst [vmem:[#allocation14 + $0x68] sm:$0xff] %v1636
      %1669 = vst [vmem:[#allocation14 + $0x70] sm:$0xff] %v1637
      %1670 = vst [vmem:[#allocation14 + $0x78] sm:$0xff] %v1638
      %1671 = vst [vmem:[#allocation14 + $0x80] sm:$0xff] %v1639
      %1672 = vst [vmem:[#allocation14 + $0x88] sm:$0xff] %v1640
      %1673 = vst [vmem:[#allocation14 + $0x90] sm:$0xff] %v1641
      %1674 = vst [vmem:[#allocation14 + $0x98] sm:$0xff] %v1642
      %1675 = vst [vmem:[#allocation14 + $0xa0] sm:$0xff] %v1643
      %1676 = vst [vmem:[#allocation14 + $0xa8] sm:$0xff] %v1644
      %1677 = vst [vmem:[#allocation14 + $0xb0] sm:$0xff] %v1645
      %1678 = vst [vmem:[#allocation14 + $0xb8] sm:$0xff] %v1646
      %1679 = vst [vmem:[#allocation14 + $0xc0] sm:$0xff] %v1647
      %1680 = vst [vmem:[#allocation14 + $0xc8] sm:$0xff] %v1648
      %1681 = vst [vmem:[#allocation14 + $0xd0] sm:$0xff] %v1649
      %1682 = vst [vmem:[#allocation14 + $0xd8] sm:$0xff] %v1650
      %1683 = vst [vmem:[#allocation14 + $0xe0] sm:$0xff] %v1651
      %1684 = vst [vmem:[#allocation14 + $0xe8] sm:$0xff] %v1652
      %1685 = vst [vmem:[#allocation14 + $0xf0] sm:$0xff] %v1653
      %1686 = vst [vmem:[#allocation14 + $0xf8] sm:$0xff] %v1654
      %v1687 = vld [vmem:[#allocation4] sm:$0xff]
      %v1688 = vld [vmem:[#allocation4 + $0x8] sm:$0xff]
      %v1689 = vld [vmem:[#allocation4 + $0x10] sm:$0xff]
      %v1690 = vld [vmem:[#allocation4 + $0x18] sm:$0xff]
      %v1691 = vld [vmem:[#allocation4 + $0x20] sm:$0xff]
      %v1692 = vld [vmem:[#allocation4 + $0x28] sm:$0xff]
      %v1693 = vld [vmem:[#allocation4 + $0x30] sm:$0xff]
      %v1694 = vld [vmem:[#allocation4 + $0x38] sm:$0xff]
      %v1695 = vld [vmem:[#allocation4 + $0x40] sm:$0xff]
      %v1696 = vld [vmem:[#allocation4 + $0x48] sm:$0xff]
      %v1697 = vld [vmem:[#allocation4 + $0x50] sm:$0xff]
      %v1698 = vld [vmem:[#allocation4 + $0x58] sm:$0xff]
      %v1699 = vld [vmem:[#allocation4 + $0x60] sm:$0xff]
      %v1700 = vld [vmem:[#allocation4 + $0x68] sm:$0xff]
      %v1701 = vld [vmem:[#allocation4 + $0x70] sm:$0xff]
      %v1702 = vld [vmem:[#allocation4 + $0x78] sm:$0xff]
      %v1703 = vld [vmem:[#allocation4 + $0x80] sm:$0xff]
      %v1704 = vld [vmem:[#allocation4 + $0x88] sm:$0xff]
      %v1705 = vld [vmem:[#allocation4 + $0x90] sm:$0xff]
      %v1706 = vld [vmem:[#allocation4 + $0x98] sm:$0xff]
      %v1707 = vld [vmem:[#allocation4 + $0xa0] sm:$0xff]
      %v1708 = vld [vmem:[#allocation4 + $0xa8] sm:$0xff]
      %v1709 = vld [vmem:[#allocation4 + $0xb0] sm:$0xff]
      %v1710 = vld [vmem:[#allocation4 + $0xb8] sm:$0xff]
      %v1711 = vld [vmem:[#allocation4 + $0xc0] sm:$0xff]
      %v1712 = vld [vmem:[#allocation4 + $0xc8] sm:$0xff]
      %v1713 = vld [vmem:[#allocation4 + $0xd0] sm:$0xff]
      %v1714 = vld [vmem:[#allocation4 + $0xd8] sm:$0xff]
      %v1715 = vld [vmem:[#allocation4 + $0xe0] sm:$0xff]
      %v1716 = vld [vmem:[#allocation4 + $0xe8] sm:$0xff]
      %v1717 = vld [vmem:[#allocation4 + $0xf0] sm:$0xff]
      %v1718 = vld [vmem:[#allocation4 + $0xf8] sm:$0xff]
      %1719 = vst [vmem:[#allocation16] sm:$0xff] %v1687
      %1720 = vst [vmem:[#allocation16 + $0x8] sm:$0xff] %v1688
      %1721 = vst [vmem:[#allocation16 + $0x10] sm:$0xff] %v1689
      %1722 = vst [vmem:[#allocation16 + $0x18] sm:$0xff] %v1690
      %1723 = vst [vmem:[#allocation16 + $0x20] sm:$0xff] %v1691
      %1724 = vst [vmem:[#allocation16 + $0x28] sm:$0xff] %v1692
      %1725 = vst [vmem:[#allocation16 + $0x30] sm:$0xff] %v1693
      %1726 = vst [vmem:[#allocation16 + $0x38] sm:$0xff] %v1694
      %1727 = vst [vmem:[#allocation16 + $0x40] sm:$0xff] %v1695
      %1728 = vst [vmem:[#allocation16 + $0x48] sm:$0xff] %v1696
      %1729 = vst [vmem:[#allocation16 + $0x50] sm:$0xff] %v1697
      %1730 = vst [vmem:[#allocation16 + $0x58] sm:$0xff] %v1698
      %1731 = vst [vmem:[#allocation16 + $0x60] sm:$0xff] %v1699
      %1732 = vst [vmem:[#allocation16 + $0x68] sm:$0xff] %v1700
      %1733 = vst [vmem:[#allocation16 + $0x70] sm:$0xff] %v1701
      %1734 = vst [vmem:[#allocation16 + $0x78] sm:$0xff] %v1702
      %1735 = vst [vmem:[#allocation16 + $0x80] sm:$0xff] %v1703
      %1736 = vst [vmem:[#allocation16 + $0x88] sm:$0xff] %v1704
      %1737 = vst [vmem:[#allocation16 + $0x90] sm:$0xff] %v1705
      %1738 = vst [vmem:[#allocation16 + $0x98] sm:$0xff] %v1706
      %1739 = vst [vmem:[#allocation16 + $0xa0] sm:$0xff] %v1707
      %1740 = vst [vmem:[#allocation16 + $0xa8] sm:$0xff] %v1708
      %1741 = vst [vmem:[#allocation16 + $0xb0] sm:$0xff] %v1709
      %1742 = vst [vmem:[#allocation16 + $0xb8] sm:$0xff] %v1710
      %1743 = vst [vmem:[#allocation16 + $0xc0] sm:$0xff] %v1711
      %1744 = vst [vmem:[#allocation16 + $0xc8] sm:$0xff] %v1712
      %1745 = vst [vmem:[#allocation16 + $0xd0] sm:$0xff] %v1713
      %1746 = vst [vmem:[#allocation16 + $0xd8] sm:$0xff] %v1714
      %1747 = vst [vmem:[#allocation16 + $0xe0] sm:$0xff] %v1715
      %1748 = vst [vmem:[#allocation16 + $0xe8] sm:$0xff] %v1716
      %1749 = vst [vmem:[#allocation16 + $0xf0] sm:$0xff] %v1717
      %1750 = vst [vmem:[#allocation16 + $0xf8] sm:$0xff] %v1718
    $region41: #{tpu_custom_call.1} parent=1 // pred_fallthru
      _
    // Predicated region
    $region42: #{tpu_custom_call.1} parent=1 // pred_check
      _
    $region43: #{tpu_custom_call.1} parent=1 // pred_check_branch
      %1752 = sbr.rel (0) target = $region45
    $region44: #{tpu_custom_call.1} parent=1 // pred_region
      %s1754 = ssub.s32 8192, 8192
      %1755 = vsyncadd [#allocation7], %s1754
      %s1756 = sshll.u32 [#allocation13], 4
      %s1757 = int_to_ptr.vmem [resolvable:$true] %s1756
      %1762 = dma.vmem_to_hbm [thread:$0]  %s1757, 8192, %s4, [#allocation7], 256, 256, 16
    $region45: #{tpu_custom_call.1} parent=1 // pred_fallthru
      _
    // Predicated region
    $region46: #{tpu_custom_call.1} parent=1 // pred_check
      _
    $region47: #{tpu_custom_call.1} parent=1 // pred_check_branch
      %1764 = sbr.rel (0) target = $region49
    $region48: #{tpu_custom_call.1} parent=1 // pred_region
      %s1766 = ssub.s32 4096, 4096
      %1767 = vsyncadd [#allocation15], %s1766
      %s1768 = sshll.u32 [#allocation14], 4
      %s1769 = int_to_ptr.vmem [resolvable:$true] %s1768
      %1774 = dma.vmem_to_hbm [thread:$0]  %s1769, 4096, %s5, [#allocation15], 128, 128, 8
    $region49: #{tpu_custom_call.1} parent=1 // pred_fallthru
      _
    // Predicated region
    $region50: #{tpu_custom_call.1} parent=1 // pred_check
      _
    $region51: #{tpu_custom_call.1} parent=1 // pred_check_branch
      %1776 = sbr.rel (0) target = $region53
    $region52: #{tpu_custom_call.1} parent=1 // pred_region
      %s1778 = ssub.s32 4096, 4096
      %1779 = vsyncadd [#allocation15], %s1778
      %s1780 = sshll.u32 [#allocation16], 4
      %s1781 = int_to_ptr.vmem [resolvable:$true] %s1780
      %1786 = dma.vmem_to_hbm [thread:$0]  %s1781, 4096, %s6, [#allocation15], 128, 128, 8
    $region53: #{tpu_custom_call.1} parent=1 // pred_fallthru
      _
    // Predicated region
    $region54: #{tpu_custom_call.1} parent=1 // pred_check
      _
    $region55: #{tpu_custom_call.1} parent=1 // pred_check_branch
      %1788 = sbr.rel (0) target = $region57
    $region56: #{tpu_custom_call.1} parent=1 // pred_region
      %1789 = dma.done [#allocation7], 8192
    $region57: #{tpu_custom_call.1} parent=1 // pred_fallthru
      _
    // Predicated region
    $region58: #{tpu_custom_call.1} parent=1 // pred_check
      _
    $region59: #{tpu_custom_call.1} parent=1 // pred_check_branch
      %1791 = sbr.rel (0) target = $region61
    $region60: #{tpu_custom_call.1} parent=1 // pred_region
      %1792 = dma.done [#allocation15], 4096
    $region61: #{tpu_custom_call.1} parent=1 // pred_fallthru
      _
    // Predicated region
    $region62: #{tpu_custom_call.1} parent=1 // pred_check
      _
    $region63: #{tpu_custom_call.1} parent=1 // pred_check_branch
      %1794 = sbr.rel (0) target = $region65
    $region64: #{tpu_custom_call.1} parent=1 // pred_region
      %1795 = dma.done [#allocation15], 4096
    $region65: #{tpu_custom_call.1} parent=1 // pred_fallthru
      _
    %1796 = vsyncpa [#allocation6], 1
    %1797 = vsyncpa [#allocation9], 1
    %1798 = vsyncpa [#allocation12], 1
    %1799 = vsyncpa [#allocation7], 1
    %1800 = vsyncpa [#allocation15], 1

</llo_original>
